<compile_context>
chip_gen: v5e
topology: v5e:2x2
jax: 0.10.0
libtpu: 0.0.40
codegen_flags: <defaults>
</compile_context>

<pallas_src>
import functools

import jax
import jax.numpy as jnp
from jax.experimental import pallas as pl
from jax.experimental.pallas import tpu as pltpu


# -----------------------------------------------------------------------------
# Kernels: only the sequential recurrence.
#   gi_ref    : (T_c, B_blk, G*Hp)  precomputed x-side gates (+ folded biases), bf16
#   w_hh_hbm  : (Hp, G*Hp)          pre-transposed recurrent weights, bf16, pl.ANY
#   h_out_ref : (T_c, B_blk, Hp)    hidden states for this chunk, bf16
#   w_scr     : (Hp, G*Hp)          VMEM staging for W_hh^T (single buffered)
#   h_scr/c_scr: (B_blk, Hp)        carried state, f32
# -----------------------------------------------------------------------------
def _gru_kernel(gi_ref, w_hh_hbm, b_hn_ref, h_out_ref,
                w_scr, dma_sem, h_scr, *, unroll):
    Hp = h_scr.shape[1]
    t_chunk = pl.program_id(1)          # time is grid axis 1 (minor)

    @pl.when(t_chunk == 0)
    def _():
        h_scr[...] = jnp.zeros_like(h_scr)
        # Stage the recurrent weights once per batch block (single VMEM buffer,
        # not a double-buffered BlockSpec -- matters for large H on v7x).
        cp = pltpu.make_async_copy(w_hh_hbm, w_scr, dma_sem)
        cp.start()
        cp.wait()

    w_hh = w_scr[...]                   # (Hp, 3*Hp) bf16, resident across steps
    b_hn = b_hn_ref[...]                # (1, Hp) f32 -- only bias needed in-kernel

    def step(i, h):
        gi = gi_ref[i]                  # (B_blk, 3*Hp) bf16; promotes to f32 below
        gh = jnp.dot(h.astype(w_hh.dtype), w_hh,
                     preferred_element_type=jnp.float32)
        # PyTorch GRU gate order [r, z, n]; slices are 128-lane aligned (Hp%128==0).
        r = jax.nn.sigmoid(gi[:, 0:Hp] + gh[:, 0:Hp])
        z = jax.nn.sigmoid(gi[:, Hp:2 * Hp] + gh[:, Hp:2 * Hp])
        n = jnp.tanh(gi[:, 2 * Hp:3 * Hp] + r * (gh[:, 2 * Hp:3 * Hp] + b_hn))
        h_new = (1.0 - z) * n + z * h
        h_out_ref[i] = h_new.astype(h_out_ref.dtype)
        return h_new

    h_scr[...] = jax.lax.fori_loop(0, gi_ref.shape[0], step, h_scr[...],
                                   unroll=unroll)


def _lstm_kernel(gi_ref, w_hh_hbm, h_out_ref,
                 w_scr, dma_sem, h_scr, c_scr, *, unroll):
    Hp = h_scr.shape[1]
    t_chunk = pl.program_id(1)

    @pl.when(t_chunk == 0)
    def _():
        h_scr[...] = jnp.zeros_like(h_scr)
        c_scr[...] = jnp.zeros_like(c_scr)
        cp = pltpu.make_async_copy(w_hh_hbm, w_scr, dma_sem)
        cp.start()
        cp.wait()

    w_hh = w_scr[...]                   # (Hp, 4*Hp) bf16

    def step(i, carry):
        h, c = carry
        # b_ih + b_hh were folded into gi in the wrapper.
        gates = gi_ref[i] + jnp.dot(h.astype(w_hh.dtype), w_hh,
                                    preferred_element_type=jnp.float32)
        # PyTorch LSTM gate order [i, f, g, o]; gate math stays f32 (v5e-safe).
        # TODO(synk): on v6e/v7x bf16 pre-activations would halve VPU/EUP pressure.
        ig = jax.nn.sigmoid(gates[:, 0:Hp])
        fg = jax.nn.sigmoid(gates[:, Hp:2 * Hp])
        gg = jnp.tanh(gates[:, 2 * Hp:3 * Hp])
        og = jax.nn.sigmoid(gates[:, 3 * Hp:4 * Hp])
        c_new = fg * c + ig * gg
        h_new = og * jnp.tanh(c_new)
        h_out_ref[i] = h_new.astype(h_out_ref.dtype)
        return (h_new, c_new)

    h_final, c_final = jax.lax.fori_loop(
        0, gi_ref.shape[0], step, (h_scr[...], c_scr[...]), unroll=unroll)
    h_scr[...] = h_final
    c_scr[...] = c_final


# -----------------------------------------------------------------------------
# Wrapper
# -----------------------------------------------------------------------------
def _round_up(v, m):
    return ((v + m - 1) // m) * m


def _vmem_limit_bytes():
    """Generation-dependent VMEM limit: ~7/8 of physical when queryable."""
    cap = None
    try:
        info = pltpu.get_tpu_info()
        for name in ("vmem_capacity_bytes", "vmem_size_bytes", "vmem_bytes"):
            cap = getattr(info, name, None)
            if cap:
                break
    except Exception:
        cap = None
    if not cap:
        return 48 * 1024 * 1024          # safe everywhere (v7x has 64 MiB / TC)
    return int(cap) * 7 // 8             # ~56 MiB on v7x, ~112 MiB on v5e/v6e


@functools.partial(jax.jit, static_argnames=("select", "time_block", "batch_block"))
def rnn_unit_forward(x, params, *, select, time_block=None, batch_block=None):
    """Forward of RNN_unit: (GRU if select==0 else LSTM) -> Linear."""
    x = x.astype(jnp.float32)                    # _x.float()
    S, B, I = x.shape
    G = 3 if select == 0 else 4
    H = params["w_hh"].shape[1]
    O = params["w_lin"].shape[0]

    Hp = _round_up(H, 128)                       # lane-aligned gate slices

    # ---- block sizing (auto unless overridden) --------------------------------
    if batch_block is None:
        B_blk = min(_round_up(B, 8), 256)        # fill the MXU M dimension
        B_pad_try = _round_up(B, B_blk)
        # v7x megacore: give both TensorCores a batch shard when batch allows it.
        if B_pad_try == B_blk and B_pad_try >= 16 and (B_pad_try // 2) % 8 == 0:
            B_blk = B_pad_try // 2
    else:
        B_blk = batch_block
    if time_block is None:
        T_c = min(32, _round_up(S, 8))           # amortize per-grid-step overhead
    else:
        T_c = time_block
    S_pad = _round_up(S, T_c)
    B_pad = _round_up(B, B_blk)
    unroll = 4 if T_c > 8 else True              # partial unroll caps vreg pressure

    # ---- per-gate padding so gate g lives at lanes [g*Hp, (g+1)*Hp) ------------
    w_ih_g = jnp.pad(params["w_ih"].reshape(G, H, I), ((0, 0), (0, Hp - H), (0, 0)))
    b_ih_g = jnp.pad(params["b_ih"].reshape(G, H), ((0, 0), (0, Hp - H)))
    b_hh_g = jnp.pad(params["b_hh"].reshape(G, H), ((0, 0), (0, Hp - H)))
    w_hh_g = jnp.pad(params["w_hh"].reshape(G, H, H), ((0, 0), (0, Hp - H), (0, Hp - H)))
    # pre-transposed recurrent weights: (in=Hp, G*Hp), bf16 for the MXU
    w_hh_t = jnp.transpose(w_hh_g, (2, 0, 1)).reshape(Hp, G * Hp).astype(jnp.bfloat16)

    # ---- bias folding ----------------------------------------------------------
    if select == 0:
        # GRU: fold b_ir/b_iz/b_in and b_hr/b_hz into gi; keep only b_hn in-kernel
        # (it must sit inside r * (gh_n + b_hn) to match PyTorch exactly).
        b_fold = jnp.concatenate([b_ih_g[:2] + b_hh_g[:2], b_ih_g[2:]], axis=0)
        b_hn = b_hh_g[2:3]                       # (1, Hp) f32
    else:
        b_fold = b_ih_g + b_hh_g                 # LSTM: fold both biases up front

    # ---- hoisted, time-parallel input projection (one big bf16 matmul) --------
    gi = jnp.einsum("sbi,ghi->sbgh",
                    x.astype(jnp.bfloat16), w_ih_g.astype(jnp.bfloat16),
                    preferred_element_type=jnp.float32)
    gi = gi + b_fold[None, None]
    gi = gi.reshape(S, B, G * Hp).astype(jnp.bfloat16)   # stream bf16 (half the DMA)
    gi = jnp.pad(gi, ((0, S_pad - S), (0, B_pad - B), (0, 0)))

    # ---- pallas_call -----------------------------------------------------------
    if select == 0:
        kernel = functools.partial(_gru_kernel, unroll=unroll)
        operands = [gi, w_hh_t, b_hn]
        in_specs = [
            pl.BlockSpec((T_c, B_blk, G * Hp), lambda b, t: (t, b, 0)),  # gi chunk
            pl.BlockSpec(memory_space=pl.ANY),                           # W_hh^T (HBM)
            pl.BlockSpec((1, Hp), lambda b, t: (0, 0)),                  # b_hn
        ]
    else:
        kernel = functools.partial(_lstm_kernel, unroll=unroll)
        operands = [gi, w_hh_t]
        in_specs = [
            pl.BlockSpec((T_c, B_blk, G * Hp), lambda b, t: (t, b, 0)),
            pl.BlockSpec(memory_space=pl.ANY),
        ]

    scratch = [
        pltpu.VMEM((Hp, G * Hp), jnp.bfloat16),   # single-buffered W_hh^T staging
        pltpu.SemaphoreType.DMA(()),
        pltpu.VMEM((B_blk, Hp), jnp.float32),     # h state
    ]
    if select != 0:
        scratch.append(pltpu.VMEM((B_blk, Hp), jnp.float32))   # LSTM cell state

    # TODO(synk): for tiny B_blk and H<=128 on v5e, explicit MXU driving
    # (matmul_push_rhs once per chunk + matmul_acc_lhs per step) would avoid
    # re-streaming W_hh through the MXU every step.
    h_all = pl.pallas_call(
        kernel,
        out_shape=jax.ShapeDtypeStruct((S_pad, B_pad, Hp), jnp.bfloat16),
        grid_spec=pltpu.PrefetchScalarGridSpec(
            num_scalar_prefetch=0,
            grid=(B_pad // B_blk, S_pad // T_c),   # (batch shards, time chunks)
            in_specs=in_specs,
            out_specs=pl.BlockSpec((T_c, B_blk, Hp), lambda b, t: (t, b, 0)),
            scratch_shapes=scratch,
        ),
        compiler_params=pltpu.CompilerParams(
            # batch independent (megacore-shardable); time carries h/c scratch.
            dimension_semantics=("parallel", "arbitrary"),
            vmem_limit_bytes=_vmem_limit_bytes(),
        ),
    )(*operands)

    # ---- hoisted Linear head on the PADDED trajectory (no lane-dim slice copy) -
    w_lin_pad = jnp.pad(params["w_lin"], ((0, 0), (0, Hp - H))).astype(jnp.bfloat16)
    y = jnp.einsum("sbh,oh->sbo", h_all, w_lin_pad,
                   preferred_element_type=jnp.float32) + params["b_lin"]
    return y[:S, :B]                              # (S, B, O) float32


# -----------------------------------------------------------------------------
# Deterministic parameter init (PyTorch-style U(-1/sqrt(H), 1/sqrt(H)))
# -----------------------------------------------------------------------------
def init_params(key, input_size, hidden_size, output_size, select):
    G = 3 if select == 0 else 4
    k = 1.0 / jnp.sqrt(hidden_size)
    ks = jax.random.split(key, 6)
    u = lambda kk, shape: jax.random.uniform(kk, shape, jnp.float32, -k, k)
    return {
        "w_ih": u(ks[0], (G * hidden_size, input_size)),
        "w_hh": u(ks[1], (G * hidden_size, hidden_size)),
        "b_ih": u(ks[2], (G * hidden_size,)),
        "b_hh": u(ks[3], (G * hidden_size,)),
        "w_lin": u(ks[4], (output_size, hidden_size)),
        "b_lin": u(ks[5], (output_size,)),
    }


# -----------------------------------------------------------------------------
# Pure-JAX reference (lax.scan, f32 throughout) for correctness checking
# -----------------------------------------------------------------------------
def rnn_unit_reference(x, params, *, select):
    x = x.astype(jnp.float32)
    H = params["w_hh"].shape[1]
    B = x.shape[1]

    def gru_step(h, x_t):
        gi = x_t @ params["w_ih"].T + params["b_ih"]
        gh = h @ params["w_hh"].T + params["b_hh"]
        r = jax.nn.sigmoid(gi[:, :H] + gh[:, :H])
        z = jax.nn.sigmoid(gi[:, H:2 * H] + gh[:, H:2 * H])
        n = jnp.tanh(gi[:, 2 * H:] + r * gh[:, 2 * H:])
        h = (1 - z) * n + z * h
        return h, h

    def lstm_step(carry, x_t):
        h, c = carry
        g = x_t @ params["w_ih"].T + h @ params["w_hh"].T + params["b_ih"] + params["b_hh"]
        i = jax.nn.sigmoid(g[:, :H])
        f = jax.nn.sigmoid(g[:, H:2 * H])
        gg = jnp.tanh(g[:, 2 * H:3 * H])
        o = jax.nn.sigmoid(g[:, 3 * H:])
        c = f * c + i * gg
        h = o * jnp.tanh(c)
        return (h, c), h

    if select == 0:
        _, hs = jax.lax.scan(gru_step, jnp.zeros((B, H), jnp.float32), x)
    else:
        _, hs = jax.lax.scan(lstm_step,
                             (jnp.zeros((B, H), jnp.float32),
                              jnp.zeros((B, H), jnp.float32)), x)
    return hs @ params["w_lin"].T + params["b_lin"]


# -----------------------------------------------------------------------------
if __name__ == "__main__":
    SEQ, BATCH, INPUT, HIDDEN, OUTPUT = 8, 2, 16, 32, 1

    key = jax.random.PRNGKey(0)
    kx, kp0, kp1 = jax.random.split(key, 3)
    x = jax.random.normal(kx, (SEQ, BATCH, INPUT), jnp.float32)

    for select in (0, 1):   # 0 -> GRU, 1 -> LSTM
        params = init_params(kp0 if select == 0 else kp1,
                             INPUT, HIDDEN, OUTPUT, select)
        y = rnn_unit_forward(x, params, select=select)
        y = jax.block_until_ready(y)
        y_ref = rnn_unit_reference(x, params, select=select)
        assert y.shape == (SEQ, BATCH, OUTPUT)
        # Tolerance accounts for bf16 streamed gi / h and bf16 MXU operands
        # (all accumulation and gate math is f32).
        assert jnp.max(jnp.abs(y - y_ref)) < 4e-2, "mismatch vs reference"

    print("KERNEL_OK")
</pallas_src>

<mosaic_0001>
module attributes {stable_mosaic.version = 11 : i64} {
  func.func @_gru_kernel(%arg0: i32, %arg1: i32, %arg2: memref<8x8x384xbf16, #tpu.memory_space<vmem>>, %arg3: memref<128x384xbf16, #tpu.memory_space<any>>, %arg4: memref<1x128xf32, #tpu.memory_space<vmem>>, %arg5: memref<8x8x128xbf16, #tpu.memory_space<vmem>>, %arg6: memref<128x384xbf16, #tpu.memory_space<vmem>>, %arg7: memref<!tpu.dma_semaphore, #tpu.memory_space<semaphore_mem>>, %arg8: memref<8x128xf32, #tpu.memory_space<vmem>>) attributes {dimension_semantics = [#tpu.dimension_semantics<parallel>, #tpu.dimension_semantics<arbitrary>], iteration_bounds = array<i64: 1, 1>, scalar_prefetch = 0 : i64, scratch_operands = 3 : i64, tpu.core_type = #tpu.core_type<tc>, window_params = [{transform_indices = @transform_0, window_bounds = array<i64: 8, 8, 384>}, {}, {pipeline_mode = #tpu.pipeline_mode<synchronous>, transform_indices = @transform_2, window_bounds = array<i64: 1, 128>}, {transform_indices = @transform_3, window_bounds = array<i64: 8, 8, 128>}]} {
    %c0_i32 = arith.constant 0 : i32
    %0 = arith.cmpi eq, %arg1, %c0_i32 : i32
    %1 = arith.extui %0 : i1 to i32
    %c0_i32_0 = arith.constant 0 : i32
    %2 = arith.cmpi ne, %1, %c0_i32_0 : i32
    scf.if %2 {
      %cst_72 = arith.constant 0.000000e+00 : f32
      %335 = vector.broadcast %cst_72 : f32 to vector<8x128xf32>
      %c0_73 = arith.constant 0 : index
      %c0_74 = arith.constant 0 : index
      %336 = vector.load %arg8[%c0_73, %c0_74] : memref<8x128xf32, #tpu.memory_space<vmem>>, vector<8x128xf32>
      tpu.vector_store %arg8[%c0_73, %c0_74], %335 {strides = array<i32>} : memref<8x128xf32, #tpu.memory_space<vmem>>, vector<8x128xf32>,
      tpu.enqueue_dma source(%arg3 : memref<128x384xbf16, #tpu.memory_space<any>>) target(%arg6 : memref<128x384xbf16, #tpu.memory_space<vmem>>) target_semaphore(%arg7 : memref<!tpu.dma_semaphore, #tpu.memory_space<semaphore_mem>>)
      tpu.wait_dma2 semaphore(%arg7 : memref<!tpu.dma_semaphore, #tpu.memory_space<semaphore_mem>>) src(%arg3 : memref<128x384xbf16, #tpu.memory_space<any>>) dst(%arg6 : memref<128x384xbf16, #tpu.memory_space<vmem>>)
    } else {
    }
    %c0 = arith.constant 0 : index
    %c0_1 = arith.constant 0 : index
    %3 = vector.load %arg6[%c0, %c0_1] : memref<128x384xbf16, #tpu.memory_space<vmem>>, vector<128x384xbf16>
    %c0_2 = arith.constant 0 : index
    %c0_3 = arith.constant 0 : index
    %4 = vector.load %arg4[%c0_2, %c0_3] : memref<1x128xf32, #tpu.memory_space<vmem>>, vector<1x128xf32>
    %c0_4 = arith.constant 0 : index
    %c0_5 = arith.constant 0 : index
    %5 = vector.load %arg8[%c0_4, %c0_5] : memref<8x128xf32, #tpu.memory_space<vmem>>, vector<8x128xf32>
    %c0_i32_6 = arith.constant 0 : i32
    %6 = arith.index_cast %c0_i32_6 : i32 to index
    %c0_7 = arith.constant 0 : index
    %c0_8 = arith.constant 0 : index
    %7 = vector.load %arg2[%6, %c0_7, %c0_8] : memref<8x8x384xbf16, #tpu.memory_space<vmem>>, vector<1x8x384xbf16>
    %8 = vector.shape_cast %7 : vector<1x8x384xbf16> to vector<8x384xbf16>
    %9 = arith.truncf %5 : vector<8x128xf32> to vector<8x128xbf16>
    %cst = arith.constant dense<0.000000e+00> : vector<8x384xf32>
    %10 = tpu.matmul %9, %3, %cst {dimension_numbers = #tpu.dot_dimension_numbers<[1], [0], [0], [1], [0, 0, 1, 1], [], []>} : vector<8x128xbf16>, vector<128x384xbf16>, vector<8x384xf32> -> vector<8x384xf32>
    %11 = vector.extract_strided_slice %8 {offsets = [0, 0], sizes = [8, 128], strides = [1, 1]} : vector<8x384xbf16> to vector<8x128xbf16>
    %12 = vector.extract_strided_slice %10 {offsets = [0, 0], sizes = [8, 128], strides = [1, 1]} : vector<8x384xf32> to vector<8x128xf32>
    %13 = arith.extf %11 : vector<8x128xbf16> to vector<8x128xf32>
    %14 = arith.addf %13, %12 : vector<8x128xf32>
    %15 = arith.negf %14 : vector<8x128xf32>
    %16 = math.exp %15 : vector<8x128xf32>
    %cst_9 = arith.constant 1.000000e+00 : f32
    %17 = vector.broadcast %cst_9 : f32 to vector<8x128xf32>
    %18 = arith.addf %17, %16 : vector<8x128xf32>
    %19 = arith.divf %17, %18 : vector<8x128xf32>
    %20 = vector.extract_strided_slice %8 {offsets = [0, 128], sizes = [8, 128], strides = [1, 1]} : vector<8x384xbf16> to vector<8x128xbf16>
    %21 = vector.extract_strided_slice %10 {offsets = [0, 128], sizes = [8, 128], strides = [1, 1]} : vector<8x384xf32> to vector<8x128xf32>
    %22 = arith.extf %20 : vector<8x128xbf16> to vector<8x128xf32>
    %23 = arith.addf %22, %21 : vector<8x128xf32>
    %24 = arith.negf %23 : vector<8x128xf32>
    %25 = math.exp %24 : vector<8x128xf32>
    %cst_10 = arith.constant 1.000000e+00 : f32
    %26 = vector.broadcast %cst_10 : f32 to vector<8x128xf32>
    %27 = arith.addf %26, %25 : vector<8x128xf32>
    %28 = arith.divf %26, %27 : vector<8x128xf32>
    %29 = vector.extract_strided_slice %8 {offsets = [0, 256], sizes = [8, 128], strides = [1, 1]} : vector<8x384xbf16> to vector<8x128xbf16>
    %30 = vector.extract_strided_slice %10 {offsets = [0, 256], sizes = [8, 128], strides = [1, 1]} : vector<8x384xf32> to vector<8x128xf32>
    %31 = vector.broadcast %4 : vector<1x128xf32> to vector<8x128xf32>
    %32 = arith.addf %30, %31 : vector<8x128xf32>
    %33 = arith.mulf %19, %32 : vector<8x128xf32>
    %34 = arith.extf %29 : vector<8x128xbf16> to vector<8x128xf32>
    %35 = arith.addf %34, %33 : vector<8x128xf32>
    %36 = math.tanh %35 : vector<8x128xf32>
    %cst_11 = arith.constant 1.000000e+00 : f32
    %37 = vector.broadcast %cst_11 : f32 to vector<8x128xf32>
    %38 = arith.subf %37, %28 : vector<8x128xf32>
    %39 = arith.mulf %38, %36 : vector<8x128xf32>
    %40 = arith.mulf %28, %5 : vector<8x128xf32>
    %41 = arith.addf %39, %40 : vector<8x128xf32>
    %42 = arith.truncf %41 : vector<8x128xf32> to vector<8x128xbf16>
    %43 = arith.index_cast %c0_i32_6 : i32 to index
    %c0_12 = arith.constant 0 : index
    %c0_13 = arith.constant 0 : index
    %44 = vector.load %arg5[%43, %c0_12, %c0_13] : memref<8x8x128xbf16, #tpu.memory_space<vmem>>, vector<1x8x128xbf16>
    %45 = vector.shape_cast %44 : vector<1x8x128xbf16> to vector<8x128xbf16>
    %46 = vector.shape_cast %42 : vector<8x128xbf16> to vector<1x8x128xbf16>
    tpu.vector_store %arg5[%43, %c0_12, %c0_13], %46 {strides = array<i32>} : memref<8x8x128xbf16, #tpu.memory_space<vmem>>, vector<1x8x128xbf16>,
    %c1_i32 = arith.constant 1 : i32
    %47 = arith.index_cast %c1_i32 : i32 to index
    %c0_14 = arith.constant 0 : index
    %c0_15 = arith.constant 0 : index
    %48 = vector.load %arg2[%47, %c0_14, %c0_15] : memref<8x8x384xbf16, #tpu.memory_space<vmem>>, vector<1x8x384xbf16>
    %49 = vector.shape_cast %48 : vector<1x8x384xbf16> to vector<8x384xbf16>
    %50 = arith.truncf %41 : vector<8x128xf32> to vector<8x128xbf16>
    %cst_16 = arith.constant dense<0.000000e+00> : vector<8x384xf32>
    %51 = tpu.matmul %50, %3, %cst_16 {dimension_numbers = #tpu.dot_dimension_numbers<[1], [0], [0], [1], [0, 0, 1, 1], [], []>} : vector<8x128xbf16>, vector<128x384xbf16>, vector<8x384xf32> -> vector<8x384xf32>
    %52 = vector.extract_strided_slice %49 {offsets = [0, 0], sizes = [8, 128], strides = [1, 1]} : vector<8x384xbf16> to vector<8x128xbf16>
    %53 = vector.extract_strided_slice %51 {offsets = [0, 0], sizes = [8, 128], strides = [1, 1]} : vector<8x384xf32> to vector<8x128xf32>
    %54 = arith.extf %52 : vector<8x128xbf16> to vector<8x128xf32>
    %55 = arith.addf %54, %53 : vector<8x128xf32>
    %56 = arith.negf %55 : vector<8x128xf32>
    %57 = math.exp %56 : vector<8x128xf32>
    %cst_17 = arith.constant 1.000000e+00 : f32
    %58 = vector.broadcast %cst_17 : f32 to vector<8x128xf32>
    %59 = arith.addf %58, %57 : vector<8x128xf32>
    %60 = arith.divf %58, %59 : vector<8x128xf32>
    %61 = vector.extract_strided_slice %49 {offsets = [0, 128], sizes = [8, 128], strides = [1, 1]} : vector<8x384xbf16> to vector<8x128xbf16>
    %62 = vector.extract_strided_slice %51 {offsets = [0, 128], sizes = [8, 128], strides = [1, 1]} : vector<8x384xf32> to vector<8x128xf32>
    %63 = arith.extf %61 : vector<8x128xbf16> to vector<8x128xf32>
    %64 = arith.addf %63, %62 : vector<8x128xf32>
    %65 = arith.negf %64 : vector<8x128xf32>
    %66 = math.exp %65 : vector<8x128xf32>
    %cst_18 = arith.constant 1.000000e+00 : f32
    %67 = vector.broadcast %cst_18 : f32 to vector<8x128xf32>
    %68 = arith.addf %67, %66 : vector<8x128xf32>
    %69 = arith.divf %67, %68 : vector<8x128xf32>
    %70 = vector.extract_strided_slice %49 {offsets = [0, 256], sizes = [8, 128], strides = [1, 1]} : vector<8x384xbf16> to vector<8x128xbf16>
    %71 = vector.extract_strided_slice %51 {offsets = [0, 256], sizes = [8, 128], strides = [1, 1]} : vector<8x384xf32> to vector<8x128xf32>
    %72 = vector.broadcast %4 : vector<1x128xf32> to vector<8x128xf32>
    %73 = arith.addf %71, %72 : vector<8x128xf32>
    %74 = arith.mulf %60, %73 : vector<8x128xf32>
    %75 = arith.extf %70 : vector<8x128xbf16> to vector<8x128xf32>
    %76 = arith.addf %75, %74 : vector<8x128xf32>
    %77 = math.tanh %76 : vector<8x128xf32>
    %cst_19 = arith.constant 1.000000e+00 : f32
    %78 = vector.broadcast %cst_19 : f32 to vector<8x128xf32>
    %79 = arith.subf %78, %69 : vector<8x128xf32>
    %80 = arith.mulf %79, %77 : vector<8x128xf32>
    %81 = arith.mulf %69, %41 : vector<8x128xf32>
    %82 = arith.addf %80, %81 : vector<8x128xf32>
    %83 = arith.truncf %82 : vector<8x128xf32> to vector<8x128xbf16>
    %84 = arith.index_cast %c1_i32 : i32 to index
    %c0_20 = arith.constant 0 : index
    %c0_21 = arith.constant 0 : index
    %85 = vector.load %arg5[%84, %c0_20, %c0_21] : memref<8x8x128xbf16, #tpu.memory_space<vmem>>, vector<1x8x128xbf16>
    %86 = vector.shape_cast %85 : vector<1x8x128xbf16> to vector<8x128xbf16>
    %87 = vector.shape_cast %83 : vector<8x128xbf16> to vector<1x8x128xbf16>
    tpu.vector_store %arg5[%84, %c0_20, %c0_21], %87 {strides = array<i32>} : memref<8x8x128xbf16, #tpu.memory_space<vmem>>, vector<1x8x128xbf16>,
    %c2_i32 = arith.constant 2 : i32
    %88 = arith.index_cast %c2_i32 : i32 to index
    %c0_22 = arith.constant 0 : index
    %c0_23 = arith.constant 0 : index
    %89 = vector.load %arg2[%88, %c0_22, %c0_23] : memref<8x8x384xbf16, #tpu.memory_space<vmem>>, vector<1x8x384xbf16>
    %90 = vector.shape_cast %89 : vector<1x8x384xbf16> to vector<8x384xbf16>
    %91 = arith.truncf %82 : vector<8x128xf32> to vector<8x128xbf16>
    %cst_24 = arith.constant dense<0.000000e+00> : vector<8x384xf32>
    %92 = tpu.matmul %91, %3, %cst_24 {dimension_numbers = #tpu.dot_dimension_numbers<[1], [0], [0], [1], [0, 0, 1, 1], [], []>} : vector<8x128xbf16>, vector<128x384xbf16>, vector<8x384xf32> -> vector<8x384xf32>
    %93 = vector.extract_strided_slice %90 {offsets = [0, 0], sizes = [8, 128], strides = [1, 1]} : vector<8x384xbf16> to vector<8x128xbf16>
    %94 = vector.extract_strided_slice %92 {offsets = [0, 0], sizes = [8, 128], strides = [1, 1]} : vector<8x384xf32> to vector<8x128xf32>
    %95 = arith.extf %93 : vector<8x128xbf16> to vector<8x128xf32>
    %96 = arith.addf %95, %94 : vector<8x128xf32>
    %97 = arith.negf %96 : vector<8x128xf32>
    %98 = math.exp %97 : vector<8x128xf32>
    %cst_25 = arith.constant 1.000000e+00 : f32
    %99 = vector.broadcast %cst_25 : f32 to vector<8x128xf32>
    %100 = arith.addf %99, %98 : vector<8x128xf32>
    %101 = arith.divf %99, %100 : vector<8x128xf32>
    %102 = vector.extract_strided_slice %90 {offsets = [0, 128], sizes = [8, 128], strides = [1, 1]} : vector<8x384xbf16> to vector<8x128xbf16>
    %103 = vector.extract_strided_slice %92 {offsets = [0, 128], sizes = [8, 128], strides = [1, 1]} : vector<8x384xf32> to vector<8x128xf32>
    %104 = arith.extf %102 : vector<8x128xbf16> to vector<8x128xf32>
    %105 = arith.addf %104, %103 : vector<8x128xf32>
    %106 = arith.negf %105 : vector<8x128xf32>
    %107 = math.exp %106 : vector<8x128xf32>
    %cst_26 = arith.constant 1.000000e+00 : f32
    %108 = vector.broadcast %cst_26 : f32 to vector<8x128xf32>
    %109 = arith.addf %108, %107 : vector<8x128xf32>
    %110 = arith.divf %108, %109 : vector<8x128xf32>
    %111 = vector.extract_strided_slice %90 {offsets = [0, 256], sizes = [8, 128], strides = [1, 1]} : vector<8x384xbf16> to vector<8x128xbf16>
    %112 = vector.extract_strided_slice %92 {offsets = [0, 256], sizes = [8, 128], strides = [1, 1]} : vector<8x384xf32> to vector<8x128xf32>
    %113 = vector.broadcast %4 : vector<1x128xf32> to vector<8x128xf32>
    %114 = arith.addf %112, %113 : vector<8x128xf32>
    %115 = arith.mulf %101, %114 : vector<8x128xf32>
    %116 = arith.extf %111 : vector<8x128xbf16> to vector<8x128xf32>
    %117 = arith.addf %116, %115 : vector<8x128xf32>
    %118 = math.tanh %117 : vector<8x128xf32>
    %cst_27 = arith.constant 1.000000e+00 : f32
    %119 = vector.broadcast %cst_27 : f32 to vector<8x128xf32>
    %120 = arith.subf %119, %110 : vector<8x128xf32>
    %121 = arith.mulf %120, %118 : vector<8x128xf32>
    %122 = arith.mulf %110, %82 : vector<8x128xf32>
    %123 = arith.addf %121, %122 : vector<8x128xf32>
    %124 = arith.truncf %123 : vector<8x128xf32> to vector<8x128xbf16>
    %125 = arith.index_cast %c2_i32 : i32 to index
    %c0_28 = arith.constant 0 : index
    %c0_29 = arith.constant 0 : index
    %126 = vector.load %arg5[%125, %c0_28, %c0_29] : memref<8x8x128xbf16, #tpu.memory_space<vmem>>, vector<1x8x128xbf16>
    %127 = vector.shape_cast %126 : vector<1x8x128xbf16> to vector<8x128xbf16>
    %128 = vector.shape_cast %124 : vector<8x128xbf16> to vector<1x8x128xbf16>
    tpu.vector_store %arg5[%125, %c0_28, %c0_29], %128 {strides = array<i32>} : memref<8x8x128xbf16, #tpu.memory_space<vmem>>, vector<1x8x128xbf16>,
    %c3_i32 = arith.constant 3 : i32
    %129 = arith.index_cast %c3_i32 : i32 to index
    %c0_30 = arith.constant 0 : index
    %c0_31 = arith.constant 0 : index
    %130 = vector.load %arg2[%129, %c0_30, %c0_31] : memref<8x8x384xbf16, #tpu.memory_space<vmem>>, vector<1x8x384xbf16>
    %131 = vector.shape_cast %130 : vector<1x8x384xbf16> to vector<8x384xbf16>
    %132 = arith.truncf %123 : vector<8x128xf32> to vector<8x128xbf16>
    %cst_32 = arith.constant dense<0.000000e+00> : vector<8x384xf32>
    %133 = tpu.matmul %132, %3, %cst_32 {dimension_numbers = #tpu.dot_dimension_numbers<[1], [0], [0], [1], [0, 0, 1, 1], [], []>} : vector<8x128xbf16>, vector<128x384xbf16>, vector<8x384xf32> -> vector<8x384xf32>
    %134 = vector.extract_strided_slice %131 {offsets = [0, 0], sizes = [8, 128], strides = [1, 1]} : vector<8x384xbf16> to vector<8x128xbf16>
    %135 = vector.extract_strided_slice %133 {offsets = [0, 0], sizes = [8, 128], strides = [1, 1]} : vector<8x384xf32> to vector<8x128xf32>
    %136 = arith.extf %134 : vector<8x128xbf16> to vector<8x128xf32>
    %137 = arith.addf %136, %135 : vector<8x128xf32>
    %138 = arith.negf %137 : vector<8x128xf32>
    %139 = math.exp %138 : vector<8x128xf32>
    %cst_33 = arith.constant 1.000000e+00 : f32
    %140 = vector.broadcast %cst_33 : f32 to vector<8x128xf32>
    %141 = arith.addf %140, %139 : vector<8x128xf32>
    %142 = arith.divf %140, %141 : vector<8x128xf32>
    %143 = vector.extract_strided_slice %131 {offsets = [0, 128], sizes = [8, 128], strides = [1, 1]} : vector<8x384xbf16> to vector<8x128xbf16>
    %144 = vector.extract_strided_slice %133 {offsets = [0, 128], sizes = [8, 128], strides = [1, 1]} : vector<8x384xf32> to vector<8x128xf32>
    %145 = arith.extf %143 : vector<8x128xbf16> to vector<8x128xf32>
    %146 = arith.addf %145, %144 : vector<8x128xf32>
    %147 = arith.negf %146 : vector<8x128xf32>
    %148 = math.exp %147 : vector<8x128xf32>
    %cst_34 = arith.constant 1.000000e+00 : f32
    %149 = vector.broadcast %cst_34 : f32 to vector<8x128xf32>
    %150 = arith.addf %149, %148 : vector<8x128xf32>
    %151 = arith.divf %149, %150 : vector<8x128xf32>
    %152 = vector.extract_strided_slice %131 {offsets = [0, 256], sizes = [8, 128], strides = [1, 1]} : vector<8x384xbf16> to vector<8x128xbf16>
    %153 = vector.extract_strided_slice %133 {offsets = [0, 256], sizes = [8, 128], strides = [1, 1]} : vector<8x384xf32> to vector<8x128xf32>
    %154 = vector.broadcast %4 : vector<1x128xf32> to vector<8x128xf32>
    %155 = arith.addf %153, %154 : vector<8x128xf32>
    %156 = arith.mulf %142, %155 : vector<8x128xf32>
    %157 = arith.extf %152 : vector<8x128xbf16> to vector<8x128xf32>
    %158 = arith.addf %157, %156 : vector<8x128xf32>
    %159 = math.tanh %158 : vector<8x128xf32>
    %cst_35 = arith.constant 1.000000e+00 : f32
    %160 = vector.broadcast %cst_35 : f32 to vector<8x128xf32>
    %161 = arith.subf %160, %151 : vector<8x128xf32>
    %162 = arith.mulf %161, %159 : vector<8x128xf32>
    %163 = arith.mulf %151, %123 : vector<8x128xf32>
    %164 = arith.addf %162, %163 : vector<8x128xf32>
    %165 = arith.truncf %164 : vector<8x128xf32> to vector<8x128xbf16>
    %166 = arith.index_cast %c3_i32 : i32 to index
    %c0_36 = arith.constant 0 : index
    %c0_37 = arith.constant 0 : index
    %167 = vector.load %arg5[%166, %c0_36, %c0_37] : memref<8x8x128xbf16, #tpu.memory_space<vmem>>, vector<1x8x128xbf16>
    %168 = vector.shape_cast %167 : vector<1x8x128xbf16> to vector<8x128xbf16>
    %169 = vector.shape_cast %165 : vector<8x128xbf16> to vector<1x8x128xbf16>
    tpu.vector_store %arg5[%166, %c0_36, %c0_37], %169 {strides = array<i32>} : memref<8x8x128xbf16, #tpu.memory_space<vmem>>, vector<1x8x128xbf16>,
    %c4_i32 = arith.constant 4 : i32
    %170 = arith.index_cast %c4_i32 : i32 to index
    %c0_38 = arith.constant 0 : index
    %c0_39 = arith.constant 0 : index
    %171 = vector.load %arg2[%170, %c0_38, %c0_39] : memref<8x8x384xbf16, #tpu.memory_space<vmem>>, vector<1x8x384xbf16>
    %172 = vector.shape_cast %171 : vector<1x8x384xbf16> to vector<8x384xbf16>
    %173 = arith.truncf %164 : vector<8x128xf32> to vector<8x128xbf16>
    %cst_40 = arith.constant dense<0.000000e+00> : vector<8x384xf32>
    %174 = tpu.matmul %173, %3, %cst_40 {dimension_numbers = #tpu.dot_dimension_numbers<[1], [0], [0], [1], [0, 0, 1, 1], [], []>} : vector<8x128xbf16>, vector<128x384xbf16>, vector<8x384xf32> -> vector<8x384xf32>
    %175 = vector.extract_strided_slice %172 {offsets = [0, 0], sizes = [8, 128], strides = [1, 1]} : vector<8x384xbf16> to vector<8x128xbf16>
    %176 = vector.extract_strided_slice %174 {offsets = [0, 0], sizes = [8, 128], strides = [1, 1]} : vector<8x384xf32> to vector<8x128xf32>
    %177 = arith.extf %175 : vector<8x128xbf16> to vector<8x128xf32>
    %178 = arith.addf %177, %176 : vector<8x128xf32>
    %179 = arith.negf %178 : vector<8x128xf32>
    %180 = math.exp %179 : vector<8x128xf32>
    %cst_41 = arith.constant 1.000000e+00 : f32
    %181 = vector.broadcast %cst_41 : f32 to vector<8x128xf32>
    %182 = arith.addf %181, %180 : vector<8x128xf32>
    %183 = arith.divf %181, %182 : vector<8x128xf32>
    %184 = vector.extract_strided_slice %172 {offsets = [0, 128], sizes = [8, 128], strides = [1, 1]} : vector<8x384xbf16> to vector<8x128xbf16>
    %185 = vector.extract_strided_slice %174 {offsets = [0, 128], sizes = [8, 128], strides = [1, 1]} : vector<8x384xf32> to vector<8x128xf32>
    %186 = arith.extf %184 : vector<8x128xbf16> to vector<8x128xf32>
    %187 = arith.addf %186, %185 : vector<8x128xf32>
    %188 = arith.negf %187 : vector<8x128xf32>
    %189 = math.exp %188 : vector<8x128xf32>
    %cst_42 = arith.constant 1.000000e+00 : f32
    %190 = vector.broadcast %cst_42 : f32 to vector<8x128xf32>
    %191 = arith.addf %190, %189 : vector<8x128xf32>
    %192 = arith.divf %190, %191 : vector<8x128xf32>
    %193 = vector.extract_strided_slice %172 {offsets = [0, 256], sizes = [8, 128], strides = [1, 1]} : vector<8x384xbf16> to vector<8x128xbf16>
    %194 = vector.extract_strided_slice %174 {offsets = [0, 256], sizes = [8, 128], strides = [1, 1]} : vector<8x384xf32> to vector<8x128xf32>
    %195 = vector.broadcast %4 : vector<1x128xf32> to vector<8x128xf32>
    %196 = arith.addf %194, %195 : vector<8x128xf32>
    %197 = arith.mulf %183, %196 : vector<8x128xf32>
    %198 = arith.extf %193 : vector<8x128xbf16> to vector<8x128xf32>
    %199 = arith.addf %198, %197 : vector<8x128xf32>
    %200 = math.tanh %199 : vector<8x128xf32>
    %cst_43 = arith.constant 1.000000e+00 : f32
    %201 = vector.broadcast %cst_43 : f32 to vector<8x128xf32>
    %202 = arith.subf %201, %192 : vector<8x128xf32>
    %203 = arith.mulf %202, %200 : vector<8x128xf32>
    %204 = arith.mulf %192, %164 : vector<8x128xf32>
    %205 = arith.addf %203, %204 : vector<8x128xf32>
    %206 = arith.truncf %205 : vector<8x128xf32> to vector<8x128xbf16>
    %207 = arith.index_cast %c4_i32 : i32 to index
    %c0_44 = arith.constant 0 : index
    %c0_45 = arith.constant 0 : index
    %208 = vector.load %arg5[%207, %c0_44, %c0_45] : memref<8x8x128xbf16, #tpu.memory_space<vmem>>, vector<1x8x128xbf16>
    %209 = vector.shape_cast %208 : vector<1x8x128xbf16> to vector<8x128xbf16>
    %210 = vector.shape_cast %206 : vector<8x128xbf16> to vector<1x8x128xbf16>
    tpu.vector_store %arg5[%207, %c0_44, %c0_45], %210 {strides = array<i32>} : memref<8x8x128xbf16, #tpu.memory_space<vmem>>, vector<1x8x128xbf16>,
    %c5_i32 = arith.constant 5 : i32
    %211 = arith.index_cast %c5_i32 : i32 to index
    %c0_46 = arith.constant 0 : index
    %c0_47 = arith.constant 0 : index
    %212 = vector.load %arg2[%211, %c0_46, %c0_47] : memref<8x8x384xbf16, #tpu.memory_space<vmem>>, vector<1x8x384xbf16>
    %213 = vector.shape_cast %212 : vector<1x8x384xbf16> to vector<8x384xbf16>
    %214 = arith.truncf %205 : vector<8x128xf32> to vector<8x128xbf16>
    %cst_48 = arith.constant dense<0.000000e+00> : vector<8x384xf32>
    %215 = tpu.matmul %214, %3, %cst_48 {dimension_numbers = #tpu.dot_dimension_numbers<[1], [0], [0], [1], [0, 0, 1, 1], [], []>} : vector<8x128xbf16>, vector<128x384xbf16>, vector<8x384xf32> -> vector<8x384xf32>
    %216 = vector.extract_strided_slice %213 {offsets = [0, 0], sizes = [8, 128], strides = [1, 1]} : vector<8x384xbf16> to vector<8x128xbf16>
    %217 = vector.extract_strided_slice %215 {offsets = [0, 0], sizes = [8, 128], strides = [1, 1]} : vector<8x384xf32> to vector<8x128xf32>
    %218 = arith.extf %216 : vector<8x128xbf16> to vector<8x128xf32>
    %219 = arith.addf %218, %217 : vector<8x128xf32>
    %220 = arith.negf %219 : vector<8x128xf32>
    %221 = math.exp %220 : vector<8x128xf32>
    %cst_49 = arith.constant 1.000000e+00 : f32
    %222 = vector.broadcast %cst_49 : f32 to vector<8x128xf32>
    %223 = arith.addf %222, %221 : vector<8x128xf32>
    %224 = arith.divf %222, %223 : vector<8x128xf32>
    %225 = vector.extract_strided_slice %213 {offsets = [0, 128], sizes = [8, 128], strides = [1, 1]} : vector<8x384xbf16> to vector<8x128xbf16>
    %226 = vector.extract_strided_slice %215 {offsets = [0, 128], sizes = [8, 128], strides = [1, 1]} : vector<8x384xf32> to vector<8x128xf32>
    %227 = arith.extf %225 : vector<8x128xbf16> to vector<8x128xf32>
    %228 = arith.addf %227, %226 : vector<8x128xf32>
    %229 = arith.negf %228 : vector<8x128xf32>
    %230 = math.exp %229 : vector<8x128xf32>
    %cst_50 = arith.constant 1.000000e+00 : f32
    %231 = vector.broadcast %cst_50 : f32 to vector<8x128xf32>
    %232 = arith.addf %231, %230 : vector<8x128xf32>
    %233 = arith.divf %231, %232 : vector<8x128xf32>
    %234 = vector.extract_strided_slice %213 {offsets = [0, 256], sizes = [8, 128], strides = [1, 1]} : vector<8x384xbf16> to vector<8x128xbf16>
    %235 = vector.extract_strided_slice %215 {offsets = [0, 256], sizes = [8, 128], strides = [1, 1]} : vector<8x384xf32> to vector<8x128xf32>
    %236 = vector.broadcast %4 : vector<1x128xf32> to vector<8x128xf32>
    %237 = arith.addf %235, %236 : vector<8x128xf32>
    %238 = arith.mulf %224, %237 : vector<8x128xf32>
    %239 = arith.extf %234 : vector<8x128xbf16> to vector<8x128xf32>
    %240 = arith.addf %239, %238 : vector<8x128xf32>
    %241 = math.tanh %240 : vector<8x128xf32>
    %cst_51 = arith.constant 1.000000e+00 : f32
    %242 = vector.broadcast %cst_51 : f32 to vector<8x128xf32>
    %243 = arith.subf %242, %233 : vector<8x128xf32>
    %244 = arith.mulf %243, %241 : vector<8x128xf32>
    %245 = arith.mulf %233, %205 : vector<8x128xf32>
    %246 = arith.addf %244, %245 : vector<8x128xf32>
    %247 = arith.truncf %246 : vector<8x128xf32> to vector<8x128xbf16>
    %248 = arith.index_cast %c5_i32 : i32 to index
    %c0_52 = arith.constant 0 : index
    %c0_53 = arith.constant 0 : index
    %249 = vector.load %arg5[%248, %c0_52, %c0_53] : memref<8x8x128xbf16, #tpu.memory_space<vmem>>, vector<1x8x128xbf16>
    %250 = vector.shape_cast %249 : vector<1x8x128xbf16> to vector<8x128xbf16>
    %251 = vector.shape_cast %247 : vector<8x128xbf16> to vector<1x8x128xbf16>
    tpu.vector_store %arg5[%248, %c0_52, %c0_53], %251 {strides = array<i32>} : memref<8x8x128xbf16, #tpu.memory_space<vmem>>, vector<1x8x128xbf16>,
    %c6_i32 = arith.constant 6 : i32
    %252 = arith.index_cast %c6_i32 : i32 to index
    %c0_54 = arith.constant 0 : index
    %c0_55 = arith.constant 0 : index
    %253 = vector.load %arg2[%252, %c0_54, %c0_55] : memref<8x8x384xbf16, #tpu.memory_space<vmem>>, vector<1x8x384xbf16>
    %254 = vector.shape_cast %253 : vector<1x8x384xbf16> to vector<8x384xbf16>
    %255 = arith.truncf %246 : vector<8x128xf32> to vector<8x128xbf16>
    %cst_56 = arith.constant dense<0.000000e+00> : vector<8x384xf32>
    %256 = tpu.matmul %255, %3, %cst_56 {dimension_numbers = #tpu.dot_dimension_numbers<[1], [0], [0], [1], [0, 0, 1, 1], [], []>} : vector<8x128xbf16>, vector<128x384xbf16>, vector<8x384xf32> -> vector<8x384xf32>
    %257 = vector.extract_strided_slice %254 {offsets = [0, 0], sizes = [8, 128], strides = [1, 1]} : vector<8x384xbf16> to vector<8x128xbf16>
    %258 = vector.extract_strided_slice %256 {offsets = [0, 0], sizes = [8, 128], strides = [1, 1]} : vector<8x384xf32> to vector<8x128xf32>
    %259 = arith.extf %257 : vector<8x128xbf16> to vector<8x128xf32>
    %260 = arith.addf %259, %258 : vector<8x128xf32>
    %261 = arith.negf %260 : vector<8x128xf32>
    %262 = math.exp %261 : vector<8x128xf32>
    %cst_57 = arith.constant 1.000000e+00 : f32
    %263 = vector.broadcast %cst_57 : f32 to vector<8x128xf32>
    %264 = arith.addf %263, %262 : vector<8x128xf32>
    %265 = arith.divf %263, %264 : vector<8x128xf32>
    %266 = vector.extract_strided_slice %254 {offsets = [0, 128], sizes = [8, 128], strides = [1, 1]} : vector<8x384xbf16> to vector<8x128xbf16>
    %267 = vector.extract_strided_slice %256 {offsets = [0, 128], sizes = [8, 128], strides = [1, 1]} : vector<8x384xf32> to vector<8x128xf32>
    %268 = arith.extf %266 : vector<8x128xbf16> to vector<8x128xf32>
    %269 = arith.addf %268, %267 : vector<8x128xf32>
    %270 = arith.negf %269 : vector<8x128xf32>
    %271 = math.exp %270 : vector<8x128xf32>
    %cst_58 = arith.constant 1.000000e+00 : f32
    %272 = vector.broadcast %cst_58 : f32 to vector<8x128xf32>
    %273 = arith.addf %272, %271 : vector<8x128xf32>
    %274 = arith.divf %272, %273 : vector<8x128xf32>
    %275 = vector.extract_strided_slice %254 {offsets = [0, 256], sizes = [8, 128], strides = [1, 1]} : vector<8x384xbf16> to vector<8x128xbf16>
    %276 = vector.extract_strided_slice %256 {offsets = [0, 256], sizes = [8, 128], strides = [1, 1]} : vector<8x384xf32> to vector<8x128xf32>
    %277 = vector.broadcast %4 : vector<1x128xf32> to vector<8x128xf32>
    %278 = arith.addf %276, %277 : vector<8x128xf32>
    %279 = arith.mulf %265, %278 : vector<8x128xf32>
    %280 = arith.extf %275 : vector<8x128xbf16> to vector<8x128xf32>
    %281 = arith.addf %280, %279 : vector<8x128xf32>
    %282 = math.tanh %281 : vector<8x128xf32>
    %cst_59 = arith.constant 1.000000e+00 : f32
    %283 = vector.broadcast %cst_59 : f32 to vector<8x128xf32>
    %284 = arith.subf %283, %274 : vector<8x128xf32>
    %285 = arith.mulf %284, %282 : vector<8x128xf32>
    %286 = arith.mulf %274, %246 : vector<8x128xf32>
    %287 = arith.addf %285, %286 : vector<8x128xf32>
    %288 = arith.truncf %287 : vector<8x128xf32> to vector<8x128xbf16>
    %289 = arith.index_cast %c6_i32 : i32 to index
    %c0_60 = arith.constant 0 : index
    %c0_61 = arith.constant 0 : index
    %290 = vector.load %arg5[%289, %c0_60, %c0_61] : memref<8x8x128xbf16, #tpu.memory_space<vmem>>, vector<1x8x128xbf16>
    %291 = vector.shape_cast %290 : vector<1x8x128xbf16> to vector<8x128xbf16>
    %292 = vector.shape_cast %288 : vector<8x128xbf16> to vector<1x8x128xbf16>
    tpu.vector_store %arg5[%289, %c0_60, %c0_61], %292 {strides = array<i32>} : memref<8x8x128xbf16, #tpu.memory_space<vmem>>, vector<1x8x128xbf16>,
    %c7_i32 = arith.constant 7 : i32
    %293 = arith.index_cast %c7_i32 : i32 to index
    %c0_62 = arith.constant 0 : index
    %c0_63 = arith.constant 0 : index
    %294 = vector.load %arg2[%293, %c0_62, %c0_63] : memref<8x8x384xbf16, #tpu.memory_space<vmem>>, vector<1x8x384xbf16>
    %295 = vector.shape_cast %294 : vector<1x8x384xbf16> to vector<8x384xbf16>
    %296 = arith.truncf %287 : vector<8x128xf32> to vector<8x128xbf16>
    %cst_64 = arith.constant dense<0.000000e+00> : vector<8x384xf32>
    %297 = tpu.matmul %296, %3, %cst_64 {dimension_numbers = #tpu.dot_dimension_numbers<[1], [0], [0], [1], [0, 0, 1, 1], [], []>} : vector<8x128xbf16>, vector<128x384xbf16>, vector<8x384xf32> -> vector<8x384xf32>
    %298 = vector.extract_strided_slice %295 {offsets = [0, 0], sizes = [8, 128], strides = [1, 1]} : vector<8x384xbf16> to vector<8x128xbf16>
    %299 = vector.extract_strided_slice %297 {offsets = [0, 0], sizes = [8, 128], strides = [1, 1]} : vector<8x384xf32> to vector<8x128xf32>
    %300 = arith.extf %298 : vector<8x128xbf16> to vector<8x128xf32>
    %301 = arith.addf %300, %299 : vector<8x128xf32>
    %302 = arith.negf %301 : vector<8x128xf32>
    %303 = math.exp %302 : vector<8x128xf32>
    %cst_65 = arith.constant 1.000000e+00 : f32
    %304 = vector.broadcast %cst_65 : f32 to vector<8x128xf32>
    %305 = arith.addf %304, %303 : vector<8x128xf32>
    %306 = arith.divf %304, %305 : vector<8x128xf32>
    %307 = vector.extract_strided_slice %295 {offsets = [0, 128], sizes = [8, 128], strides = [1, 1]} : vector<8x384xbf16> to vector<8x128xbf16>
    %308 = vector.extract_strided_slice %297 {offsets = [0, 128], sizes = [8, 128], strides = [1, 1]} : vector<8x384xf32> to vector<8x128xf32>
    %309 = arith.extf %307 : vector<8x128xbf16> to vector<8x128xf32>
    %310 = arith.addf %309, %308 : vector<8x128xf32>
    %311 = arith.negf %310 : vector<8x128xf32>
    %312 = math.exp %311 : vector<8x128xf32>
    %cst_66 = arith.constant 1.000000e+00 : f32
    %313 = vector.broadcast %cst_66 : f32 to vector<8x128xf32>
    %314 = arith.addf %313, %312 : vector<8x128xf32>
    %315 = arith.divf %313, %314 : vector<8x128xf32>
    %316 = vector.extract_strided_slice %295 {offsets = [0, 256], sizes = [8, 128], strides = [1, 1]} : vector<8x384xbf16> to vector<8x128xbf16>
    %317 = vector.extract_strided_slice %297 {offsets = [0, 256], sizes = [8, 128], strides = [1, 1]} : vector<8x384xf32> to vector<8x128xf32>
    %318 = vector.broadcast %4 : vector<1x128xf32> to vector<8x128xf32>
    %319 = arith.addf %317, %318 : vector<8x128xf32>
    %320 = arith.mulf %306, %319 : vector<8x128xf32>
    %321 = arith.extf %316 : vector<8x128xbf16> to vector<8x128xf32>
    %322 = arith.addf %321, %320 : vector<8x128xf32>
    %323 = math.tanh %322 : vector<8x128xf32>
    %cst_67 = arith.constant 1.000000e+00 : f32
    %324 = vector.broadcast %cst_67 : f32 to vector<8x128xf32>
    %325 = arith.subf %324, %315 : vector<8x128xf32>
    %326 = arith.mulf %325, %323 : vector<8x128xf32>
    %327 = arith.mulf %315, %287 : vector<8x128xf32>
    %328 = arith.addf %326, %327 : vector<8x128xf32>
    %329 = arith.truncf %328 : vector<8x128xf32> to vector<8x128xbf16>
    %330 = arith.index_cast %c7_i32 : i32 to index
    %c0_68 = arith.constant 0 : index
    %c0_69 = arith.constant 0 : index
    %331 = vector.load %arg5[%330, %c0_68, %c0_69] : memref<8x8x128xbf16, #tpu.memory_space<vmem>>, vector<1x8x128xbf16>
    %332 = vector.shape_cast %331 : vector<1x8x128xbf16> to vector<8x128xbf16>
    %333 = vector.shape_cast %329 : vector<8x128xbf16> to vector<1x8x128xbf16>
    tpu.vector_store %arg5[%330, %c0_68, %c0_69], %333 {strides = array<i32>} : memref<8x8x128xbf16, #tpu.memory_space<vmem>>, vector<1x8x128xbf16>,
    %c8_i32 = arith.constant 8 : i32
    %c0_70 = arith.constant 0 : index
    %c0_71 = arith.constant 0 : index
    %334 = vector.load %arg8[%c0_70, %c0_71] : memref<8x128xf32, #tpu.memory_space<vmem>>, vector<8x128xf32>
    tpu.vector_store %arg8[%c0_70, %c0_71], %328 {strides = array<i32>} : memref<8x128xf32, #tpu.memory_space<vmem>>, vector<8x128xf32>,
    return
  }
  func.func @transform_0(%arg0: i32, %arg1: i32) -> (i32, i32, i32) {
    %c0_i32 = arith.constant 0 : i32
    %c0_i32_0 = arith.constant 0 : i32
    return %arg1, %arg0, %c0_i32 : i32, i32, i32
  }
  func.func @transform_2(%arg0: i32, %arg1: i32) -> (i32, i32) {
    %c0_i32 = arith.constant 0 : i32
    %c0_i32_0 = arith.constant 0 : i32
    %c0_i32_1 = arith.constant 0 : i32
    return %c0_i32, %c0_i32_0 : i32, i32
  }
  func.func @transform_3(%arg0: i32, %arg1: i32) -> (i32, i32, i32) {
    %c0_i32 = arith.constant 0 : i32
    %c0_i32_0 = arith.constant 0 : i32
    return %arg1, %arg0, %c0_i32 : i32, i32, i32
  }
}

</mosaic_0001>

<llo_original>
// kernel: rnn_unit_forward.1
$region0: #{rnn_unit_forward.1}
  #allocation0 [shape = 'u32[]', space=smem, size = 0x4, offset = 0x4, fixed_abs, tag = 'smem constant byte address 0x4 - core index']
  #allocation1 [shape = 'u32[72,128]{1,0:T(1,128)}', space=vmem, size = 0x9000, scoped, tag = 'internal scratch']
  #allocation2 [shape = 'bf16[128,384]{1,0:T(8,128)(2,1)}', space=vmem, size = 0x18000, scoped, tag = 'scratch operand']
  #allocation3 [shape = 's32[1]{0}', space=sflag, size = 0x4, scoped, tag = 'scratch operand']
  #allocation4 [shape = 'f32[8,128]{1,0:T(8,128)}', space=vmem, size = 0x1000, scoped, tag = 'scratch operand']
  #allocation5 [shape = 's32[]', space=sflag, size = 0x4, offset = 0, fixed_abs, tag = 'sflag constant byte address 0x0 - dummy sync flag']
  %s0 = inlined_call_operand.vmem [shape: bf16[8,8,384], index: 0, kind: input, shape index: {}]
  %s1 = inlined_call_operand.vmem [shape: bf16[128,384], index: 1, kind: input, shape index: {}]
  %s2 = inlined_call_operand.vmem [shape: f32[1,128], index: 2, kind: input, shape index: {}]
  %s3 = inlined_call_operand.vmem [shape: bf16[8,8,128], index: 3, kind: output, shape index: {}]
  %s4 = sld [smem:[#allocation0]]
  $region41: #{rnn_unit_forward.1} parent=0
    _
  %s6 = ssub.s32 1, %s4
  %s7 = scalar_select 0, %s6, %s4
  // Predicated region
  $region2: #{rnn_unit_forward.1} parent=0 // pred_check
    _
  $region3: #{rnn_unit_forward.1} parent=0 // pred_check_branch
    %9 = sbr.rel (0) target = $region5
  $region4: #{rnn_unit_forward.1} parent=0 // pred_region
    _
  $region5: #{rnn_unit_forward.1} parent=0 // pred_fallthru
    _
  // Predicated region
  $region6: #{rnn_unit_forward.1} parent=0 // pred_check
    _
  $region7: #{rnn_unit_forward.1} parent=0 // pred_check_branch
    %11 = sbr.rel (0) target = $region9
  $region8: #{rnn_unit_forward.1} parent=0 // pred_region
    _
  $region9: #{rnn_unit_forward.1} parent=0 // pred_fallthru
    _
  %p12 = scmp.eq.s32.totalorder 0, 0
  // Predicated region
  $region10: #{rnn_unit_forward.1} parent=0 // pred_check
    %p13 = pneg %p12
  $region11: #{rnn_unit_forward.1} parent=0 // pred_check_branch
    %15 = sbr.rel (%p13) target = $region13
  $region12: #{rnn_unit_forward.1} parent=0 // pred_region
    %16 = vst [vmem:[#allocation4] sm:$0xff] 0.0
    // Predicated region
    $region14: #{rnn_unit_forward.1} parent=12 // pred_check
      _
    $region15: #{rnn_unit_forward.1} parent=12 // pred_check_branch
      %18 = sbr.rel (0) target = $region17
    $region16: #{rnn_unit_forward.1} parent=12 // pred_region
      loop: start=0, step=1, limit=1
      $region18: #{rnn_unit_forward.1} parent=16 // loop_pre_header
        _
      $region19: #{rnn_unit_forward.1} parent=16 // loop_header
        %s20 = sphi 0, %s24
        %p21 = scmp.ge.s32.totalorder %s20, 1
        %s25 = sphi %s1, %s1
        %s26 = sphi [#allocation2], [#allocation2]
      $region20: #{rnn_unit_forward.1} parent=16 // loop_header_branch
        %23 = sbr.rel (%p21) target = $region24
      $region21: #{rnn_unit_forward.1} parent=16 // loop_body
        %v27 = vld [vmem:[%s25] sm:$0xff]
        %28 = vst [vmem:[%s26] sm:$0xff] %v27
        %v29 = vld [vmem:[%s25 + $0x8] sm:$0xff]
        %30 = vst [vmem:[%s26 + $0x8] sm:$0xff] %v29
        %v31 = vld [vmem:[%s25 + $0x10] sm:$0xff]
        %32 = vst [vmem:[%s26 + $0x10] sm:$0xff] %v31
        %v33 = vld [vmem:[%s25 + $0x18] sm:$0xff]
        %34 = vst [vmem:[%s26 + $0x18] sm:$0xff] %v33
        %v35 = vld [vmem:[%s25 + $0x20] sm:$0xff]
        %36 = vst [vmem:[%s26 + $0x20] sm:$0xff] %v35
        %v37 = vld [vmem:[%s25 + $0x28] sm:$0xff]
        %38 = vst [vmem:[%s26 + $0x28] sm:$0xff] %v37
        %v39 = vld [vmem:[%s25 + $0x30] sm:$0xff]
        %40 = vst [vmem:[%s26 + $0x30] sm:$0xff] %v39
        %v41 = vld [vmem:[%s25 + $0x38] sm:$0xff]
        %42 = vst [vmem:[%s26 + $0x38] sm:$0xff] %v41
        %v43 = vld [vmem:[%s25 + $0x40] sm:$0xff]
        %44 = vst [vmem:[%s26 + $0x40] sm:$0xff] %v43
        %v45 = vld [vmem:[%s25 + $0x48] sm:$0xff]
        %46 = vst [vmem:[%s26 + $0x48] sm:$0xff] %v45
        %v47 = vld [vmem:[%s25 + $0x50] sm:$0xff]
        %48 = vst [vmem:[%s26 + $0x50] sm:$0xff] %v47
        %v49 = vld [vmem:[%s25 + $0x58] sm:$0xff]
        %50 = vst [vmem:[%s26 + $0x58] sm:$0xff] %v49
        %v51 = vld [vmem:[%s25 + $0x60] sm:$0xff]
        %52 = vst [vmem:[%s26 + $0x60] sm:$0xff] %v51
        %v53 = vld [vmem:[%s25 + $0x68] sm:$0xff]
        %54 = vst [vmem:[%s26 + $0x68] sm:$0xff] %v53
        %v55 = vld [vmem:[%s25 + $0x70] sm:$0xff]
        %56 = vst [vmem:[%s26 + $0x70] sm:$0xff] %v55
        %v57 = vld [vmem:[%s25 + $0x78] sm:$0xff]
        %58 = vst [vmem:[%s26 + $0x78] sm:$0xff] %v57
        %v59 = vld [vmem:[%s25 + $0x80] sm:$0xff]
        %60 = vst [vmem:[%s26 + $0x80] sm:$0xff] %v59
        %v61 = vld [vmem:[%s25 + $0x88] sm:$0xff]
        %62 = vst [vmem:[%s26 + $0x88] sm:$0xff] %v61
        %v63 = vld [vmem:[%s25 + $0x90] sm:$0xff]
        %64 = vst [vmem:[%s26 + $0x90] sm:$0xff] %v63
        %v65 = vld [vmem:[%s25 + $0x98] sm:$0xff]
        %66 = vst [vmem:[%s26 + $0x98] sm:$0xff] %v65
        %v67 = vld [vmem:[%s25 + $0xa0] sm:$0xff]
        %68 = vst [vmem:[%s26 + $0xa0] sm:$0xff] %v67
        %v69 = vld [vmem:[%s25 + $0xa8] sm:$0xff]
        %70 = vst [vmem:[%s26 + $0xa8] sm:$0xff] %v69
        %v71 = vld [vmem:[%s25 + $0xb0] sm:$0xff]
        %72 = vst [vmem:[%s26 + $0xb0] sm:$0xff] %v71
        %v73 = vld [vmem:[%s25 + $0xb8] sm:$0xff]
        %74 = vst [vmem:[%s26 + $0xb8] sm:$0xff] %v73
      $region22: #{rnn_unit_forward.1} parent=16 // loop_footer
        %s24 = sadd.s32 1, %s20
      $region23: #{rnn_unit_forward.1} parent=16 // loop_footer_branch
        %19 = sbr.rel target = $region19
      $region24: #{rnn_unit_forward.1} parent=16 // loop_exit
        _
    $region17: #{rnn_unit_forward.1} parent=12 // pred_fallthru
      _
    // Predicated region
    $region25: #{rnn_unit_forward.1} parent=12 // pred_check
      _
    $region26: #{rnn_unit_forward.1} parent=12 // pred_check_branch
      %76 = sbr.rel target = $region28
    $region27: #{rnn_unit_forward.1} parent=12 // pred_region
      _
    $region28: #{rnn_unit_forward.1} parent=12 // pred_fallthru
      _
    // Predicated region
    $region29: #{rnn_unit_forward.1} parent=12 // pred_check
      _
    $region30: #{rnn_unit_forward.1} parent=12 // pred_check_branch
      %79 = sbr.rel (0) target = $region32
    $region31: #{rnn_unit_forward.1} parent=12 // pred_region
      %80 = vsyncadd [#allocation3], 3072
    $region32: #{rnn_unit_forward.1} parent=12 // pred_fallthru
      _
    %s81 = smul.u32 4, 16
    %s82 = smul.u32 %s81, 3
    %s83 = sshll.u32 %s82, 4
    %84 = dma.done [#allocation3], %s83
  $region13: #{rnn_unit_forward.1} parent=0 // pred_fallthru
    _
  %v85 = vld [vmem:[#allocation2] sm:$0xff]
  %v86 = vld [vmem:[#allocation2 + $0x8] sm:$0xf]
  %v87 = vld [vmem:[#allocation2 + $0xc] sm:$0xff]
  %v88 = vld [vmem:[#allocation2 + $0x14] sm:$0xf]
  %v89 = vld [vmem:[#allocation2 + $0x18] sm:$0xff]
  %v90 = vld [vmem:[#allocation2 + $0x20] sm:$0xf]
  %v91 = vld [vmem:[#allocation2 + $0x24] sm:$0xff]
  %v92 = vld [vmem:[#allocation2 + $0x2c] sm:$0xf]
  %v93 = vld [vmem:[#allocation2 + $0x30] sm:$0xff]
  %v94 = vld [vmem:[#allocation2 + $0x38] sm:$0xf]
  %v95 = vld [vmem:[#allocation2 + $0x3c] sm:$0xff]
  %v96 = vld [vmem:[#allocation2 + $0x44] sm:$0xf]
  %v97 = vld [vmem:[#allocation2 + $0x48] sm:$0xff]
  %v98 = vld [vmem:[#allocation2 + $0x50] sm:$0xf]
  %v99 = vld [vmem:[#allocation2 + $0x54] sm:$0xff]
  %v100 = vld [vmem:[#allocation2 + $0x5c] sm:$0xf]
  %v101 = vld [vmem:[#allocation2 + $0x60] sm:$0xff]
  %v102 = vld [vmem:[#allocation2 + $0x68] sm:$0xf]
  %v103 = vld [vmem:[#allocation2 + $0x6c] sm:$0xff]
  %v104 = vld [vmem:[#allocation2 + $0x74] sm:$0xf]
  %v105 = vld [vmem:[#allocation2 + $0x78] sm:$0xff]
  %v106 = vld [vmem:[#allocation2 + $0x80] sm:$0xf]
  %v107 = vld [vmem:[#allocation2 + $0x84] sm:$0xff]
  %v108 = vld [vmem:[#allocation2 + $0x8c] sm:$0xf]
  %v109 = vld [vmem:[#allocation2 + $0x90] sm:$0xff]
  %v110 = vld [vmem:[#allocation2 + $0x98] sm:$0xf]
  %v111 = vld [vmem:[#allocation2 + $0x9c] sm:$0xff]
  %v112 = vld [vmem:[#allocation2 + $0xa4] sm:$0xf]
  %v113 = vld [vmem:[#allocation2 + $0xa8] sm:$0xff]
  %v114 = vld [vmem:[#allocation2 + $0xb0] sm:$0xf]
  %v115 = vld [vmem:[#allocation2 + $0xb4] sm:$0xff]
  %v116 = vld [vmem:[#allocation2 + $0xbc] sm:$0xf]
  %v117 = vld [vmem:[%s2] sm:$0x1]
  %v118 = vld [vmem:[#allocation4] sm:$0xff]
  %v119 = vld [vmem:[%s0] sm:$0xff]
  %v120 = vld [vmem:[%s0 + $0x8] sm:$0xf]
  %v121 = vpack.c.bf16 %v118, %v118
  %v154 = vunpack.c.l.b16 %v85
  %v155 = vunpack.c.h.b16 %v85
  %v156 = vunpack.c.l.b16 %v86
  %v157 = vunpack.c.l.b16 %v87
  %v158 = vunpack.c.h.b16 %v87
  %v159 = vunpack.c.l.b16 %v88
  %v160 = vunpack.c.l.b16 %v89
  %v161 = vunpack.c.h.b16 %v89
  %v162 = vunpack.c.l.b16 %v90
  %v163 = vunpack.c.l.b16 %v91
  %v164 = vunpack.c.h.b16 %v91
  %v165 = vunpack.c.l.b16 %v92
  %v166 = vunpack.c.l.b16 %v93
  %v167 = vunpack.c.h.b16 %v93
  %v168 = vunpack.c.l.b16 %v94
  %v169 = vunpack.c.l.b16 %v95
  %v170 = vunpack.c.h.b16 %v95
  %v171 = vunpack.c.l.b16 %v96
  %v172 = vunpack.c.l.b16 %v97
  %v173 = vunpack.c.h.b16 %v97
  %v174 = vunpack.c.l.b16 %v98
  %v175 = vunpack.c.l.b16 %v99
  %v176 = vunpack.c.h.b16 %v99
  %v177 = vunpack.c.l.b16 %v100
  %v178 = vunpack.c.l.b16 %v101
  %v179 = vunpack.c.h.b16 %v101
  %v180 = vunpack.c.l.b16 %v102
  %v181 = vunpack.c.l.b16 %v103
  %v182 = vunpack.c.h.b16 %v103
  %v183 = vunpack.c.l.b16 %v104
  %v184 = vunpack.c.l.b16 %v105
  %v185 = vunpack.c.h.b16 %v105
  %v186 = vunpack.c.l.b16 %v106
  %v187 = vunpack.c.l.b16 %v107
  %v188 = vunpack.c.h.b16 %v107
  %v189 = vunpack.c.l.b16 %v108
  %v190 = vunpack.c.l.b16 %v109
  %v191 = vunpack.c.h.b16 %v109
  %v192 = vunpack.c.l.b16 %v110
  %v193 = vunpack.c.l.b16 %v111
  %v194 = vunpack.c.h.b16 %v111
  %v195 = vunpack.c.l.b16 %v112
  %v196 = vunpack.c.l.b16 %v113
  %v197 = vunpack.c.h.b16 %v113
  %v198 = vunpack.c.l.b16 %v114
  %v199 = vunpack.c.l.b16 %v115
  %v200 = vunpack.c.h.b16 %v115
  %v201 = vunpack.c.l.b16 %v116
  %v202 = vpack.c.b16 %v157, %v154
  %v203 = vpack.c.b16 %v158, %v155
  %v204 = vpack.c.b16 %v159, %v156
  %v205 = vpack.c.b16 %v163, %v160
  %v206 = vpack.c.b16 %v164, %v161
  %v207 = vpack.c.b16 %v165, %v162
  %v208 = vpack.c.b16 %v169, %v166
  %v209 = vpack.c.b16 %v170, %v167
  %v210 = vpack.c.b16 %v171, %v168
  %v211 = vpack.c.b16 %v175, %v172
  %v212 = vpack.c.b16 %v176, %v173
  %v213 = vpack.c.b16 %v177, %v174
  %v214 = vpack.c.b16 %v181, %v178
  %v215 = vpack.c.b16 %v182, %v179
  %v216 = vpack.c.b16 %v183, %v180
  %v217 = vpack.c.b16 %v187, %v184
  %v218 = vpack.c.b16 %v188, %v185
  %v219 = vpack.c.b16 %v189, %v186
  %v220 = vpack.c.b16 %v193, %v190
  %v221 = vpack.c.b16 %v194, %v191
  %v222 = vpack.c.b16 %v195, %v192
  %v223 = vpack.c.b16 %v199, %v196
  %v224 = vpack.c.b16 %v200, %v197
  %v225 = vpack.c.b16 %v201, %v198
  %250 = vmatpush.bf16.msra.mxu0 %v223
  %251 = vmatpush.bf16.msra.mxu0 %v220
  %252 = vmatpush.bf16.msra.mxu0 %v217
  %253 = vmatpush.bf16.msra.mxu0 %v214
  %254 = vmatpush.bf16.msra.mxu0 %v211
  %255 = vmatpush.bf16.msra.mxu0 %v208
  %256 = vmatpush.bf16.msra.mxu0 %v205
  %257 = vmatpush.bf16.msra.mxu0 %v202
  %258 = vmatmul.bf16.gmra.mxu0 %v121
  %v259 = vpop.f32.mrf.mxu0
  %v260 = vadd.f32 0.0, %v259
  %v261 = vpop.f32.mrf.mxu0
  %262 = vdwg.mxu0
  %263 = vmatpush.bf16.msra.mxu0 %v224
  %264 = vmatpush.bf16.msra.mxu0 %v221
  %265 = vmatpush.bf16.msra.mxu0 %v218
  %266 = vmatpush.bf16.msra.mxu0 %v215
  %267 = vmatpush.bf16.msra.mxu0 %v212
  %268 = vmatpush.bf16.msra.mxu0 %v209
  %269 = vmatpush.bf16.msra.mxu0 %v206
  %270 = vmatpush.bf16.msra.mxu0 %v203
  %271 = vmatmul.bf16.gmra.mxu0 %v121
  %v272 = vpop.f32.mrf.mxu0
  %v273 = vadd.f32 0.0, %v272
  %v274 = vpop.f32.mrf.mxu0
  %275 = vdwg.mxu0
  %276 = vmatpush.bf16.msra.mxu0 %v225
  %277 = vmatpush.bf16.msra.mxu0 %v222
  %278 = vmatpush.bf16.msra.mxu0 %v219
  %279 = vmatpush.bf16.msra.mxu0 %v216
  %280 = vmatpush.bf16.msra.mxu0 %v213
  %281 = vmatpush.bf16.msra.mxu0 %v210
  %282 = vmatpush.bf16.msra.mxu0 %v207
  %283 = vmatpush.bf16.msra.mxu0 %v204
  %284 = vmatmul.bf16.gmra.mxu0 %v121
  %v285 = vpop.f32.mrf.mxu0
  %v286 = vadd.f32 0.0, %v285
  %v287 = vpop.f32.mrf.mxu0
  %288 = vdwg.mxu0
  %v289 = vunpack.c.l.bf16 %v119
  %v290 = vadd.f32 %v289, %v260
  %v291 = vxor.u32 %v290, 2147483648
  %v292 = vmul.f32 %v291, 1.442695
  %v293 = vpow.pop %v292
  %v294 = vadd.f32 %v293, 1.0
  %v295 = vrcp.pop %v294
  %v296 = vmul.f32 %v294, %v295
  %v297 = vsub.f32 1.0, %v296
  %v298 = vmul.f32 %v295, %v297
  %v299 = vadd.f32 %v295, %v298
  %vm300 = vweird.f32 %v294
  %vm301 = vweird.f32 %v295
  %vm302 = vmor %vm300, %vm301
  %v303 = vsel %vm302, %v295, %v299
  %v304 = vand.u32 2147483647, %v294
  %vm305 = vcmp.eq.f32.partialorder %v304, 8.507059e+37
  %v306 = vand.u32 %v294, 2147483648
  %v307 = vor.u32 1.1754944e-38, %v306
  %v308 = vsel %vm305, %v307, %v303
  %v309 = vmul.f32 1.0, %v308
  %v311 = vrot.slane %v119, 4
  %v313 = vunpack.c.l.bf16 %v311
  %v314 = vadd.f32 %v313, %v273
  %v315 = vxor.u32 %v314, 2147483648
  %v316 = vmul.f32 %v315, 1.442695
  %v317 = vpow.pop %v316
  %v318 = vadd.f32 %v317, 1.0
  %v319 = vrcp.pop %v318
  %v320 = vmul.f32 %v318, %v319
  %v321 = vsub.f32 1.0, %v320
  %v322 = vmul.f32 %v319, %v321
  %v323 = vadd.f32 %v319, %v322
  %vm324 = vweird.f32 %v318
  %vm325 = vweird.f32 %v319
  %vm326 = vmor %vm324, %vm325
  %v327 = vsel %vm326, %v319, %v323
  %v328 = vand.u32 2147483647, %v318
  %vm329 = vcmp.eq.f32.partialorder %v328, 8.507059e+37
  %v330 = vand.u32 %v318, 2147483648
  %v331 = vor.u32 1.1754944e-38, %v330
  %v332 = vsel %vm329, %v331, %v327
  %v333 = vmul.f32 1.0, %v332
  %v335 = vperm.slane %v117, 0
  %v337 = vadd.f32 %v286, %v335
  %v338 = vmul.f32 %v309, %v337
  %v339 = vunpack.c.l.bf16 %v120
  %v340 = vadd.f32 %v339, %v338
  %v341 = vtanh.pop %v340
  %v342 = vsub.f32 1.0, %v333
  %v343 = vmul.f32 %v342, %v341
  %v344 = vmul.f32 %v333, %v118
  %v345 = vadd.f32 %v343, %v344
  %v346 = vpack.c.bf16 %v345, %v345
  %347 = vst [vmem:[%s3] sm:$0xf] %v346
  %s348 = scalar_lea.vmem %s0, 12
  %v349 = vld [vmem:[%s348] sm:$0xff]
  %v350 = vld [vmem:[%s348 + $0x8] sm:$0xf]
  %351 = vmatpush.bf16.msra.mxu0 %v223
  %352 = vmatpush.bf16.msra.mxu0 %v220
  %353 = vmatpush.bf16.msra.mxu0 %v217
  %354 = vmatpush.bf16.msra.mxu0 %v214
  %355 = vmatpush.bf16.msra.mxu0 %v211
  %356 = vmatpush.bf16.msra.mxu0 %v208
  %357 = vmatpush.bf16.msra.mxu0 %v205
  %358 = vmatpush.bf16.msra.mxu0 %v202
  %359 = vmatmul.bf16.gmra.mxu0 %v346
  %v360 = vpop.f32.mrf.mxu0
  %v361 = vadd.f32 0.0, %v360
  %v362 = vpop.f32.mrf.mxu0
  %363 = vdwg.mxu0
  %364 = vmatpush.bf16.msra.mxu0 %v224
  %365 = vmatpush.bf16.msra.mxu0 %v221
  %366 = vmatpush.bf16.msra.mxu0 %v218
  %367 = vmatpush.bf16.msra.mxu0 %v215
  %368 = vmatpush.bf16.msra.mxu0 %v212
  %369 = vmatpush.bf16.msra.mxu0 %v209
  %370 = vmatpush.bf16.msra.mxu0 %v206
  %371 = vmatpush.bf16.msra.mxu0 %v203
  %372 = vmatmul.bf16.gmra.mxu0 %v346
  %v373 = vpop.f32.mrf.mxu0
  %v374 = vadd.f32 0.0, %v373
  %v375 = vpop.f32.mrf.mxu0
  %376 = vdwg.mxu0
  %377 = vmatpush.bf16.msra.mxu0 %v225
  %378 = vmatpush.bf16.msra.mxu0 %v222
  %379 = vmatpush.bf16.msra.mxu0 %v219
  %380 = vmatpush.bf16.msra.mxu0 %v216
  %381 = vmatpush.bf16.msra.mxu0 %v213
  %382 = vmatpush.bf16.msra.mxu0 %v210
  %383 = vmatpush.bf16.msra.mxu0 %v207
  %384 = vmatpush.bf16.msra.mxu0 %v204
  %385 = vmatmul.bf16.gmra.mxu0 %v346
  %v386 = vpop.f32.mrf.mxu0
  %v387 = vadd.f32 0.0, %v386
  %v388 = vpop.f32.mrf.mxu0
  %389 = vdwg.mxu0
  %v390 = vunpack.c.l.bf16 %v349
  %v391 = vadd.f32 %v390, %v361
  %v392 = vxor.u32 %v391, 2147483648
  %v393 = vmul.f32 %v392, 1.442695
  %v394 = vpow.pop %v393
  %v395 = vadd.f32 %v394, 1.0
  %v396 = vrcp.pop %v395
  %v397 = vmul.f32 %v395, %v396
  %v398 = vsub.f32 1.0, %v397
  %v399 = vmul.f32 %v396, %v398
  %v400 = vadd.f32 %v396, %v399
  %vm401 = vweird.f32 %v395
  %vm402 = vweird.f32 %v396
  %vm403 = vmor %vm401, %vm402
  %v404 = vsel %vm403, %v396, %v400
  %v405 = vand.u32 2147483647, %v395
  %vm406 = vcmp.eq.f32.partialorder %v405, 8.507059e+37
  %v407 = vand.u32 %v395, 2147483648
  %v408 = vor.u32 1.1754944e-38, %v407
  %v409 = vsel %vm406, %v408, %v404
  %v410 = vmul.f32 1.0, %v409
  %v412 = vrot.slane %v349, 4
  %v414 = vunpack.c.l.bf16 %v412
  %v415 = vadd.f32 %v414, %v374
  %v416 = vxor.u32 %v415, 2147483648
  %v417 = vmul.f32 %v416, 1.442695
  %v418 = vpow.pop %v417
  %v419 = vadd.f32 %v418, 1.0
  %v420 = vrcp.pop %v419
  %v421 = vmul.f32 %v419, %v420
  %v422 = vsub.f32 1.0, %v421
  %v423 = vmul.f32 %v420, %v422
  %v424 = vadd.f32 %v420, %v423
  %vm425 = vweird.f32 %v419
  %vm426 = vweird.f32 %v420
  %vm427 = vmor %vm425, %vm426
  %v428 = vsel %vm427, %v420, %v424
  %v429 = vand.u32 2147483647, %v419
  %vm430 = vcmp.eq.f32.partialorder %v429, 8.507059e+37
  %v431 = vand.u32 %v419, 2147483648
  %v432 = vor.u32 1.1754944e-38, %v431
  %v433 = vsel %vm430, %v432, %v428
  %v434 = vmul.f32 1.0, %v433
  %v435 = vadd.f32 %v387, %v335
  %v436 = vmul.f32 %v410, %v435
  %v437 = vunpack.c.l.bf16 %v350
  %v438 = vadd.f32 %v437, %v436
  %v439 = vtanh.pop %v438
  %v440 = vsub.f32 1.0, %v434
  %v441 = vmul.f32 %v440, %v439
  %v442 = vmul.f32 %v434, %v345
  %v443 = vadd.f32 %v441, %v442
  %v444 = vpack.c.bf16 %v443, %v443
  %s445 = scalar_lea.vmem %s3, 4
  %446 = vst [vmem:[%s445] sm:$0xf] %v444
  %s447 = scalar_lea.vmem %s0, 24
  %v448 = vld [vmem:[%s447] sm:$0xff]
  %v449 = vld [vmem:[%s447 + $0x8] sm:$0xf]
  %450 = vmatpush.bf16.msra.mxu0 %v223
  %451 = vmatpush.bf16.msra.mxu0 %v220
  %452 = vmatpush.bf16.msra.mxu0 %v217
  %453 = vmatpush.bf16.msra.mxu0 %v214
  %454 = vmatpush.bf16.msra.mxu0 %v211
  %455 = vmatpush.bf16.msra.mxu0 %v208
  %456 = vmatpush.bf16.msra.mxu0 %v205
  %457 = vmatpush.bf16.msra.mxu0 %v202
  %458 = vmatmul.bf16.gmra.mxu0 %v444
  %v459 = vpop.f32.mrf.mxu0
  %v460 = vadd.f32 0.0, %v459
  %v461 = vpop.f32.mrf.mxu0
  %462 = vdwg.mxu0
  %463 = vmatpush.bf16.msra.mxu0 %v224
  %464 = vmatpush.bf16.msra.mxu0 %v221
  %465 = vmatpush.bf16.msra.mxu0 %v218
  %466 = vmatpush.bf16.msra.mxu0 %v215
  %467 = vmatpush.bf16.msra.mxu0 %v212
  %468 = vmatpush.bf16.msra.mxu0 %v209
  %469 = vmatpush.bf16.msra.mxu0 %v206
  %470 = vmatpush.bf16.msra.mxu0 %v203
  %471 = vmatmul.bf16.gmra.mxu0 %v444
  %v472 = vpop.f32.mrf.mxu0
  %v473 = vadd.f32 0.0, %v472
  %v474 = vpop.f32.mrf.mxu0
  %475 = vdwg.mxu0
  %476 = vmatpush.bf16.msra.mxu0 %v225
  %477 = vmatpush.bf16.msra.mxu0 %v222
  %478 = vmatpush.bf16.msra.mxu0 %v219
  %479 = vmatpush.bf16.msra.mxu0 %v216
  %480 = vmatpush.bf16.msra.mxu0 %v213
  %481 = vmatpush.bf16.msra.mxu0 %v210
  %482 = vmatpush.bf16.msra.mxu0 %v207
  %483 = vmatpush.bf16.msra.mxu0 %v204
  %484 = vmatmul.bf16.gmra.mxu0 %v444
  %v485 = vpop.f32.mrf.mxu0
  %v486 = vadd.f32 0.0, %v485
  %v487 = vpop.f32.mrf.mxu0
  %488 = vdwg.mxu0
  %v489 = vunpack.c.l.bf16 %v448
  %v490 = vadd.f32 %v489, %v460
  %v491 = vxor.u32 %v490, 2147483648
  %v492 = vmul.f32 %v491, 1.442695
  %v493 = vpow.pop %v492
  %v494 = vadd.f32 %v493, 1.0
  %v495 = vrcp.pop %v494
  %v496 = vmul.f32 %v494, %v495
  %v497 = vsub.f32 1.0, %v496
  %v498 = vmul.f32 %v495, %v497
  %v499 = vadd.f32 %v495, %v498
  %vm500 = vweird.f32 %v494
  %vm501 = vweird.f32 %v495
  %vm502 = vmor %vm500, %vm501
  %v503 = vsel %vm502, %v495, %v499
  %v504 = vand.u32 2147483647, %v494
  %vm505 = vcmp.eq.f32.partialorder %v504, 8.507059e+37
  %v506 = vand.u32 %v494, 2147483648
  %v507 = vor.u32 1.1754944e-38, %v506
  %v508 = vsel %vm505, %v507, %v503
  %v509 = vmul.f32 1.0, %v508
  %v511 = vrot.slane %v448, 4
  %v513 = vunpack.c.l.bf16 %v511
  %v514 = vadd.f32 %v513, %v473
  %v515 = vxor.u32 %v514, 2147483648
  %v516 = vmul.f32 %v515, 1.442695
  %v517 = vpow.pop %v516
  %v518 = vadd.f32 %v517, 1.0
  %v519 = vrcp.pop %v518
  %v520 = vmul.f32 %v518, %v519
  %v521 = vsub.f32 1.0, %v520
  %v522 = vmul.f32 %v519, %v521
  %v523 = vadd.f32 %v519, %v522
  %vm524 = vweird.f32 %v518
  %vm525 = vweird.f32 %v519
  %vm526 = vmor %vm524, %vm525
  %v527 = vsel %vm526, %v519, %v523
  %v528 = vand.u32 2147483647, %v518
  %vm529 = vcmp.eq.f32.partialorder %v528, 8.507059e+37
  %v530 = vand.u32 %v518, 2147483648
  %v531 = vor.u32 1.1754944e-38, %v530
  %v532 = vsel %vm529, %v531, %v527
  %v533 = vmul.f32 1.0, %v532
  %v534 = vadd.f32 %v486, %v335
  %v535 = vmul.f32 %v509, %v534
  %v536 = vunpack.c.l.bf16 %v449
  %v537 = vadd.f32 %v536, %v535
  %v538 = vtanh.pop %v537
  %v539 = vsub.f32 1.0, %v533
  %v540 = vmul.f32 %v539, %v538
  %v541 = vmul.f32 %v533, %v443
  %v542 = vadd.f32 %v540, %v541
  %v543 = vpack.c.bf16 %v542, %v542
  %s544 = scalar_lea.vmem %s3, 8
  %545 = vst [vmem:[%s544] sm:$0xf] %v543
  %s546 = scalar_lea.vmem %s0, 36
  %v547 = vld [vmem:[%s546] sm:$0xff]
  %v548 = vld [vmem:[%s546 + $0x8] sm:$0xf]
  %549 = vmatpush.bf16.msra.mxu0 %v223
  %550 = vmatpush.bf16.msra.mxu0 %v220
  %551 = vmatpush.bf16.msra.mxu0 %v217
  %552 = vmatpush.bf16.msra.mxu0 %v214
  %553 = vmatpush.bf16.msra.mxu0 %v211
  %554 = vmatpush.bf16.msra.mxu0 %v208
  %555 = vmatpush.bf16.msra.mxu0 %v205
  %556 = vmatpush.bf16.msra.mxu0 %v202
  %557 = vmatmul.bf16.gmra.mxu0 %v543
  %v558 = vpop.f32.mrf.mxu0
  %v559 = vadd.f32 0.0, %v558
  %v560 = vpop.f32.mrf.mxu0
  %561 = vdwg.mxu0
  %562 = vmatpush.bf16.msra.mxu0 %v224
  %563 = vmatpush.bf16.msra.mxu0 %v221
  %564 = vmatpush.bf16.msra.mxu0 %v218
  %565 = vmatpush.bf16.msra.mxu0 %v215
  %566 = vmatpush.bf16.msra.mxu0 %v212
  %567 = vmatpush.bf16.msra.mxu0 %v209
  %568 = vmatpush.bf16.msra.mxu0 %v206
  %569 = vmatpush.bf16.msra.mxu0 %v203
  %570 = vmatmul.bf16.gmra.mxu0 %v543
  %v571 = vpop.f32.mrf.mxu0
  %v572 = vadd.f32 0.0, %v571
  %v573 = vpop.f32.mrf.mxu0
  %574 = vdwg.mxu0
  %575 = vmatpush.bf16.msra.mxu0 %v225
  %576 = vmatpush.bf16.msra.mxu0 %v222
  %577 = vmatpush.bf16.msra.mxu0 %v219
  %578 = vmatpush.bf16.msra.mxu0 %v216
  %579 = vmatpush.bf16.msra.mxu0 %v213
  %580 = vmatpush.bf16.msra.mxu0 %v210
  %581 = vmatpush.bf16.msra.mxu0 %v207
  %582 = vmatpush.bf16.msra.mxu0 %v204
  %583 = vmatmul.bf16.gmra.mxu0 %v543
  %v584 = vpop.f32.mrf.mxu0
  %v585 = vadd.f32 0.0, %v584
  %v586 = vpop.f32.mrf.mxu0
  %587 = vdwg.mxu0
  %v588 = vunpack.c.l.bf16 %v547
  %v589 = vadd.f32 %v588, %v559
  %v590 = vxor.u32 %v589, 2147483648
  %v591 = vmul.f32 %v590, 1.442695
  %v592 = vpow.pop %v591
  %v593 = vadd.f32 %v592, 1.0
  %v594 = vrcp.pop %v593
  %v595 = vmul.f32 %v593, %v594
  %v596 = vsub.f32 1.0, %v595
  %v597 = vmul.f32 %v594, %v596
  %v598 = vadd.f32 %v594, %v597
  %vm599 = vweird.f32 %v593
  %vm600 = vweird.f32 %v594
  %vm601 = vmor %vm599, %vm600
  %v602 = vsel %vm601, %v594, %v598
  %v603 = vand.u32 2147483647, %v593
  %vm604 = vcmp.eq.f32.partialorder %v603, 8.507059e+37
  %v605 = vand.u32 %v593, 2147483648
  %v606 = vor.u32 1.1754944e-38, %v605
  %v607 = vsel %vm604, %v606, %v602
  %v608 = vmul.f32 1.0, %v607
  %v610 = vrot.slane %v547, 4
  %v612 = vunpack.c.l.bf16 %v610
  %v613 = vadd.f32 %v612, %v572
  %v614 = vxor.u32 %v613, 2147483648
  %v615 = vmul.f32 %v614, 1.442695
  %v616 = vpow.pop %v615
  %v617 = vadd.f32 %v616, 1.0
  %v618 = vrcp.pop %v617
  %v619 = vmul.f32 %v617, %v618
  %v620 = vsub.f32 1.0, %v619
  %v621 = vmul.f32 %v618, %v620
  %v622 = vadd.f32 %v618, %v621
  %vm623 = vweird.f32 %v617
  %vm624 = vweird.f32 %v618
  %vm625 = vmor %vm623, %vm624
  %v626 = vsel %vm625, %v618, %v622
  %v627 = vand.u32 2147483647, %v617
  %vm628 = vcmp.eq.f32.partialorder %v627, 8.507059e+37
  %v629 = vand.u32 %v617, 2147483648
  %v630 = vor.u32 1.1754944e-38, %v629
  %v631 = vsel %vm628, %v630, %v626
  %v632 = vmul.f32 1.0, %v631
  %v633 = vadd.f32 %v585, %v335
  %v634 = vmul.f32 %v608, %v633
  %v635 = vunpack.c.l.bf16 %v548
  %v636 = vadd.f32 %v635, %v634
  %v637 = vtanh.pop %v636
  %v638 = vsub.f32 1.0, %v632
  %v639 = vmul.f32 %v638, %v637
  %v640 = vmul.f32 %v632, %v542
  %v641 = vadd.f32 %v639, %v640
  %v642 = vpack.c.bf16 %v641, %v641
  %s643 = scalar_lea.vmem %s3, 12
  %644 = vst [vmem:[%s643] sm:$0xf] %v642
  %s645 = scalar_lea.vmem %s0, 48
  %v646 = vld [vmem:[%s645] sm:$0xff]
  %v647 = vld [vmem:[%s645 + $0x8] sm:$0xf]
  %648 = vmatpush.bf16.msra.mxu0 %v223
  %649 = vmatpush.bf16.msra.mxu0 %v220
  %650 = vmatpush.bf16.msra.mxu0 %v217
  %651 = vmatpush.bf16.msra.mxu0 %v214
  %652 = vmatpush.bf16.msra.mxu0 %v211
  %653 = vmatpush.bf16.msra.mxu0 %v208
  %654 = vmatpush.bf16.msra.mxu0 %v205
  %655 = vmatpush.bf16.msra.mxu0 %v202
  %656 = vmatmul.bf16.gmra.mxu0 %v642
  %v657 = vpop.f32.mrf.mxu0
  %v658 = vadd.f32 0.0, %v657
  %v659 = vpop.f32.mrf.mxu0
  %660 = vdwg.mxu0
  %661 = vmatpush.bf16.msra.mxu0 %v224
  %662 = vmatpush.bf16.msra.mxu0 %v221
  %663 = vmatpush.bf16.msra.mxu0 %v218
  %664 = vmatpush.bf16.msra.mxu0 %v215
  %665 = vmatpush.bf16.msra.mxu0 %v212
  %666 = vmatpush.bf16.msra.mxu0 %v209
  %667 = vmatpush.bf16.msra.mxu0 %v206
  %668 = vmatpush.bf16.msra.mxu0 %v203
  %669 = vmatmul.bf16.gmra.mxu0 %v642
  %v670 = vpop.f32.mrf.mxu0
  %v671 = vadd.f32 0.0, %v670
  %v672 = vpop.f32.mrf.mxu0
  %673 = vdwg.mxu0
  %674 = vmatpush.bf16.msra.mxu0 %v225
  %675 = vmatpush.bf16.msra.mxu0 %v222
  %676 = vmatpush.bf16.msra.mxu0 %v219
  %677 = vmatpush.bf16.msra.mxu0 %v216
  %678 = vmatpush.bf16.msra.mxu0 %v213
  %679 = vmatpush.bf16.msra.mxu0 %v210
  %680 = vmatpush.bf16.msra.mxu0 %v207
  %681 = vmatpush.bf16.msra.mxu0 %v204
  %682 = vmatmul.bf16.gmra.mxu0 %v642
  %v683 = vpop.f32.mrf.mxu0
  %v684 = vadd.f32 0.0, %v683
  %v685 = vpop.f32.mrf.mxu0
  %686 = vdwg.mxu0
  %v687 = vunpack.c.l.bf16 %v646
  %v688 = vadd.f32 %v687, %v658
  %v689 = vxor.u32 %v688, 2147483648
  %v690 = vmul.f32 %v689, 1.442695
  %v691 = vpow.pop %v690
  %v692 = vadd.f32 %v691, 1.0
  %v693 = vrcp.pop %v692
  %v694 = vmul.f32 %v692, %v693
  %v695 = vsub.f32 1.0, %v694
  %v696 = vmul.f32 %v693, %v695
  %v697 = vadd.f32 %v693, %v696
  %vm698 = vweird.f32 %v692
  %vm699 = vweird.f32 %v693
  %vm700 = vmor %vm698, %vm699
  %v701 = vsel %vm700, %v693, %v697
  %v702 = vand.u32 2147483647, %v692
  %vm703 = vcmp.eq.f32.partialorder %v702, 8.507059e+37
  %v704 = vand.u32 %v692, 2147483648
  %v705 = vor.u32 1.1754944e-38, %v704
  %v706 = vsel %vm703, %v705, %v701
  %v707 = vmul.f32 1.0, %v706
  %v709 = vrot.slane %v646, 4
  %v711 = vunpack.c.l.bf16 %v709
  %v712 = vadd.f32 %v711, %v671
  %v713 = vxor.u32 %v712, 2147483648
  %v714 = vmul.f32 %v713, 1.442695
  %v715 = vpow.pop %v714
  %v716 = vadd.f32 %v715, 1.0
  %v717 = vrcp.pop %v716
  %v718 = vmul.f32 %v716, %v717
  %v719 = vsub.f32 1.0, %v718
  %v720 = vmul.f32 %v717, %v719
  %v721 = vadd.f32 %v717, %v720
  %vm722 = vweird.f32 %v716
  %vm723 = vweird.f32 %v717
  %vm724 = vmor %vm722, %vm723
  %v725 = vsel %vm724, %v717, %v721
  %v726 = vand.u32 2147483647, %v716
  %vm727 = vcmp.eq.f32.partialorder %v726, 8.507059e+37
  %v728 = vand.u32 %v716, 2147483648
  %v729 = vor.u32 1.1754944e-38, %v728
  %v730 = vsel %vm727, %v729, %v725
  %v731 = vmul.f32 1.0, %v730
  %v732 = vadd.f32 %v684, %v335
  %v733 = vmul.f32 %v707, %v732
  %v734 = vunpack.c.l.bf16 %v647
  %v735 = vadd.f32 %v734, %v733
  %v736 = vtanh.pop %v735
  %v737 = vsub.f32 1.0, %v731
  %v738 = vmul.f32 %v737, %v736
  %v739 = vmul.f32 %v731, %v641
  %v740 = vadd.f32 %v738, %v739
  %v741 = vpack.c.bf16 %v740, %v740
  %s742 = scalar_lea.vmem %s3, 16
  %743 = vst [vmem:[%s742] sm:$0xf] %v741
  %s744 = scalar_lea.vmem %s0, 60
  %v745 = vld [vmem:[%s744] sm:$0xff]
  %v746 = vld [vmem:[%s744 + $0x8] sm:$0xf]
  %747 = vmatpush.bf16.msra.mxu0 %v223
  %748 = vmatpush.bf16.msra.mxu0 %v220
  %749 = vmatpush.bf16.msra.mxu0 %v217
  %750 = vmatpush.bf16.msra.mxu0 %v214
  %751 = vmatpush.bf16.msra.mxu0 %v211
  %752 = vmatpush.bf16.msra.mxu0 %v208
  %753 = vmatpush.bf16.msra.mxu0 %v205
  %754 = vmatpush.bf16.msra.mxu0 %v202
  %755 = vmatmul.bf16.gmra.mxu0 %v741
  %v756 = vpop.f32.mrf.mxu0
  %v757 = vadd.f32 0.0, %v756
  %v758 = vpop.f32.mrf.mxu0
  %759 = vdwg.mxu0
  %760 = vmatpush.bf16.msra.mxu0 %v224
  %761 = vmatpush.bf16.msra.mxu0 %v221
  %762 = vmatpush.bf16.msra.mxu0 %v218
  %763 = vmatpush.bf16.msra.mxu0 %v215
  %764 = vmatpush.bf16.msra.mxu0 %v212
  %765 = vmatpush.bf16.msra.mxu0 %v209
  %766 = vmatpush.bf16.msra.mxu0 %v206
  %767 = vmatpush.bf16.msra.mxu0 %v203
  %768 = vmatmul.bf16.gmra.mxu0 %v741
  %v769 = vpop.f32.mrf.mxu0
  %v770 = vadd.f32 0.0, %v769
  %v771 = vpop.f32.mrf.mxu0
  %772 = vdwg.mxu0
  %773 = vmatpush.bf16.msra.mxu0 %v225
  %774 = vmatpush.bf16.msra.mxu0 %v222
  %775 = vmatpush.bf16.msra.mxu0 %v219
  %776 = vmatpush.bf16.msra.mxu0 %v216
  %777 = vmatpush.bf16.msra.mxu0 %v213
  %778 = vmatpush.bf16.msra.mxu0 %v210
  %779 = vmatpush.bf16.msra.mxu0 %v207
  %780 = vmatpush.bf16.msra.mxu0 %v204
  %781 = vmatmul.bf16.gmra.mxu0 %v741
  %v782 = vpop.f32.mrf.mxu0
  %v783 = vadd.f32 0.0, %v782
  %v784 = vpop.f32.mrf.mxu0
  %785 = vdwg.mxu0
  %v786 = vunpack.c.l.bf16 %v745
  %v787 = vadd.f32 %v786, %v757
  %v788 = vxor.u32 %v787, 2147483648
  %v789 = vmul.f32 %v788, 1.442695
  %v790 = vpow.pop %v789
  %v791 = vadd.f32 %v790, 1.0
  %v792 = vrcp.pop %v791
  %v793 = vmul.f32 %v791, %v792
  %v794 = vsub.f32 1.0, %v793
  %v795 = vmul.f32 %v792, %v794
  %v796 = vadd.f32 %v792, %v795
  %vm797 = vweird.f32 %v791
  %vm798 = vweird.f32 %v792
  %vm799 = vmor %vm797, %vm798
  %v800 = vsel %vm799, %v792, %v796
  %v801 = vand.u32 2147483647, %v791
  %vm802 = vcmp.eq.f32.partialorder %v801, 8.507059e+37
  %v803 = vand.u32 %v791, 2147483648
  %v804 = vor.u32 1.1754944e-38, %v803
  %v805 = vsel %vm802, %v804, %v800
  %v806 = vmul.f32 1.0, %v805
  %v808 = vrot.slane %v745, 4
  %v810 = vunpack.c.l.bf16 %v808
  %v811 = vadd.f32 %v810, %v770
  %v812 = vxor.u32 %v811, 2147483648
  %v813 = vmul.f32 %v812, 1.442695
  %v814 = vpow.pop %v813
  %v815 = vadd.f32 %v814, 1.0
  %v816 = vrcp.pop %v815
  %v817 = vmul.f32 %v815, %v816
  %v818 = vsub.f32 1.0, %v817
  %v819 = vmul.f32 %v816, %v818
  %v820 = vadd.f32 %v816, %v819
  %vm821 = vweird.f32 %v815
  %vm822 = vweird.f32 %v816
  %vm823 = vmor %vm821, %vm822
  %v824 = vsel %vm823, %v816, %v820
  %v825 = vand.u32 2147483647, %v815
  %vm826 = vcmp.eq.f32.partialorder %v825, 8.507059e+37
  %v827 = vand.u32 %v815, 2147483648
  %v828 = vor.u32 1.1754944e-38, %v827
  %v829 = vsel %vm826, %v828, %v824
  %v830 = vmul.f32 1.0, %v829
  %v831 = vadd.f32 %v783, %v335
  %v832 = vmul.f32 %v806, %v831
  %v833 = vunpack.c.l.bf16 %v746
  %v834 = vadd.f32 %v833, %v832
  %v835 = vtanh.pop %v834
  %v836 = vsub.f32 1.0, %v830
  %v837 = vmul.f32 %v836, %v835
  %v838 = vmul.f32 %v830, %v740
  %v839 = vadd.f32 %v837, %v838
  %v840 = vpack.c.bf16 %v839, %v839
  %s841 = scalar_lea.vmem %s3, 20
  %842 = vst [vmem:[%s841] sm:$0xf] %v840
  %s843 = scalar_lea.vmem %s0, 72
  %v844 = vld [vmem:[%s843] sm:$0xff]
  %v845 = vld [vmem:[%s843 + $0x8] sm:$0xf]
  %846 = vmatpush.bf16.msra.mxu0 %v223
  %847 = vmatpush.bf16.msra.mxu0 %v220
  %848 = vmatpush.bf16.msra.mxu0 %v217
  %849 = vmatpush.bf16.msra.mxu0 %v214
  %850 = vmatpush.bf16.msra.mxu0 %v211
  %851 = vmatpush.bf16.msra.mxu0 %v208
  %852 = vmatpush.bf16.msra.mxu0 %v205
  %853 = vmatpush.bf16.msra.mxu0 %v202
  %854 = vmatmul.bf16.gmra.mxu0 %v840
  %v855 = vpop.f32.mrf.mxu0
  %v856 = vadd.f32 0.0, %v855
  %v857 = vpop.f32.mrf.mxu0
  %858 = vdwg.mxu0
  %859 = vmatpush.bf16.msra.mxu0 %v224
  %860 = vmatpush.bf16.msra.mxu0 %v221
  %861 = vmatpush.bf16.msra.mxu0 %v218
  %862 = vmatpush.bf16.msra.mxu0 %v215
  %863 = vmatpush.bf16.msra.mxu0 %v212
  %864 = vmatpush.bf16.msra.mxu0 %v209
  %865 = vmatpush.bf16.msra.mxu0 %v206
  %866 = vmatpush.bf16.msra.mxu0 %v203
  %867 = vmatmul.bf16.gmra.mxu0 %v840
  %v868 = vpop.f32.mrf.mxu0
  %v869 = vadd.f32 0.0, %v868
  %v870 = vpop.f32.mrf.mxu0
  %871 = vdwg.mxu0
  %872 = vmatpush.bf16.msra.mxu0 %v225
  %873 = vmatpush.bf16.msra.mxu0 %v222
  %874 = vmatpush.bf16.msra.mxu0 %v219
  %875 = vmatpush.bf16.msra.mxu0 %v216
  %876 = vmatpush.bf16.msra.mxu0 %v213
  %877 = vmatpush.bf16.msra.mxu0 %v210
  %878 = vmatpush.bf16.msra.mxu0 %v207
  %879 = vmatpush.bf16.msra.mxu0 %v204
  %880 = vmatmul.bf16.gmra.mxu0 %v840
  %v881 = vpop.f32.mrf.mxu0
  %v882 = vadd.f32 0.0, %v881
  %v883 = vpop.f32.mrf.mxu0
  %884 = vdwg.mxu0
  %v885 = vunpack.c.l.bf16 %v844
  %v886 = vadd.f32 %v885, %v856
  %v887 = vxor.u32 %v886, 2147483648
  %v888 = vmul.f32 %v887, 1.442695
  %v889 = vpow.pop %v888
  %v890 = vadd.f32 %v889, 1.0
  %v891 = vrcp.pop %v890
  %v892 = vmul.f32 %v890, %v891
  %v893 = vsub.f32 1.0, %v892
  %v894 = vmul.f32 %v891, %v893
  %v895 = vadd.f32 %v891, %v894
  %vm896 = vweird.f32 %v890
  %vm897 = vweird.f32 %v891
  %vm898 = vmor %vm896, %vm897
  %v899 = vsel %vm898, %v891, %v895
  %v900 = vand.u32 2147483647, %v890
  %vm901 = vcmp.eq.f32.partialorder %v900, 8.507059e+37
  %v902 = vand.u32 %v890, 2147483648
  %v903 = vor.u32 1.1754944e-38, %v902
  %v904 = vsel %vm901, %v903, %v899
  %v905 = vmul.f32 1.0, %v904
  %v907 = vrot.slane %v844, 4
  %v909 = vunpack.c.l.bf16 %v907
  %v910 = vadd.f32 %v909, %v869
  %v911 = vxor.u32 %v910, 2147483648
  %v912 = vmul.f32 %v911, 1.442695
  %v913 = vpow.pop %v912
  %v914 = vadd.f32 %v913, 1.0
  %v915 = vrcp.pop %v914
  %v916 = vmul.f32 %v914, %v915
  %v917 = vsub.f32 1.0, %v916
  %v918 = vmul.f32 %v915, %v917
  %v919 = vadd.f32 %v915, %v918
  %vm920 = vweird.f32 %v914
  %vm921 = vweird.f32 %v915
  %vm922 = vmor %vm920, %vm921
  %v923 = vsel %vm922, %v915, %v919
  %v924 = vand.u32 2147483647, %v914
  %vm925 = vcmp.eq.f32.partialorder %v924, 8.507059e+37
  %v926 = vand.u32 %v914, 2147483648
  %v927 = vor.u32 1.1754944e-38, %v926
  %v928 = vsel %vm925, %v927, %v923
  %v929 = vmul.f32 1.0, %v928
  %v930 = vadd.f32 %v882, %v335
  %v931 = vmul.f32 %v905, %v930
  %v932 = vunpack.c.l.bf16 %v845
  %v933 = vadd.f32 %v932, %v931
  %v934 = vtanh.pop %v933
  %v935 = vsub.f32 1.0, %v929
  %v936 = vmul.f32 %v935, %v934
  %v937 = vmul.f32 %v929, %v839
  %v938 = vadd.f32 %v936, %v937
  %v939 = vpack.c.bf16 %v938, %v938
  %s940 = scalar_lea.vmem %s3, 24
  %941 = vst [vmem:[%s940] sm:$0xf] %v939
  %s942 = scalar_lea.vmem %s0, 84
  %v943 = vld [vmem:[%s942] sm:$0xff]
  %v944 = vld [vmem:[%s942 + $0x8] sm:$0xf]
  %945 = vmatpush.bf16.msra.mxu0 %v223
  %946 = vmatpush.bf16.msra.mxu0 %v220
  %947 = vmatpush.bf16.msra.mxu0 %v217
  %948 = vmatpush.bf16.msra.mxu0 %v214
  %949 = vmatpush.bf16.msra.mxu0 %v211
  %950 = vmatpush.bf16.msra.mxu0 %v208
  %951 = vmatpush.bf16.msra.mxu0 %v205
  %952 = vmatpush.bf16.msra.mxu0 %v202
  %953 = vmatmul.bf16.gmra.mxu0 %v939
  %v954 = vpop.f32.mrf.mxu0
  %v955 = vadd.f32 0.0, %v954
  %v956 = vpop.f32.mrf.mxu0
  %957 = vdwg.mxu0
  %958 = vmatpush.bf16.msra.mxu0 %v224
  %959 = vmatpush.bf16.msra.mxu0 %v221
  %960 = vmatpush.bf16.msra.mxu0 %v218
  %961 = vmatpush.bf16.msra.mxu0 %v215
  %962 = vmatpush.bf16.msra.mxu0 %v212
  %963 = vmatpush.bf16.msra.mxu0 %v209
  %964 = vmatpush.bf16.msra.mxu0 %v206
  %965 = vmatpush.bf16.msra.mxu0 %v203
  %966 = vmatmul.bf16.gmra.mxu0 %v939
  %v967 = vpop.f32.mrf.mxu0
  %v968 = vadd.f32 0.0, %v967
  %v969 = vpop.f32.mrf.mxu0
  %970 = vdwg.mxu0
  %971 = vmatpush.bf16.msra.mxu0 %v225
  %972 = vmatpush.bf16.msra.mxu0 %v222
  %973 = vmatpush.bf16.msra.mxu0 %v219
  %974 = vmatpush.bf16.msra.mxu0 %v216
  %975 = vmatpush.bf16.msra.mxu0 %v213
  %976 = vmatpush.bf16.msra.mxu0 %v210
  %977 = vmatpush.bf16.msra.mxu0 %v207
  %978 = vmatpush.bf16.msra.mxu0 %v204
  %979 = vmatmul.bf16.gmra.mxu0 %v939
  %v980 = vpop.f32.mrf.mxu0
  %v981 = vadd.f32 0.0, %v980
  %v982 = vpop.f32.mrf.mxu0
  %983 = vdwg.mxu0
  %v984 = vunpack.c.l.bf16 %v943
  %v985 = vadd.f32 %v984, %v955
  %v986 = vxor.u32 %v985, 2147483648
  %v987 = vmul.f32 %v986, 1.442695
  %v988 = vpow.pop %v987
  %v989 = vadd.f32 %v988, 1.0
  %v990 = vrcp.pop %v989
  %v991 = vmul.f32 %v989, %v990
  %v992 = vsub.f32 1.0, %v991
  %v993 = vmul.f32 %v990, %v992
  %v994 = vadd.f32 %v990, %v993
  %vm995 = vweird.f32 %v989
  %vm996 = vweird.f32 %v990
  %vm997 = vmor %vm995, %vm996
  %v998 = vsel %vm997, %v990, %v994
  %v999 = vand.u32 2147483647, %v989
  %vm1000 = vcmp.eq.f32.partialorder %v999, 8.507059e+37
  %v1001 = vand.u32 %v989, 2147483648
  %v1002 = vor.u32 1.1754944e-38, %v1001
  %v1003 = vsel %vm1000, %v1002, %v998
  %v1004 = vmul.f32 1.0, %v1003
  %v1006 = vrot.slane %v943, 4
  %v1008 = vunpack.c.l.bf16 %v1006
  %v1009 = vadd.f32 %v1008, %v968
  %v1010 = vxor.u32 %v1009, 2147483648
  %v1011 = vmul.f32 %v1010, 1.442695
  %v1012 = vpow.pop %v1011
  %v1013 = vadd.f32 %v1012, 1.0
  %v1014 = vrcp.pop %v1013
  %v1015 = vmul.f32 %v1013, %v1014
  %v1016 = vsub.f32 1.0, %v1015
  %v1017 = vmul.f32 %v1014, %v1016
  %v1018 = vadd.f32 %v1014, %v1017
  %vm1019 = vweird.f32 %v1013
  %vm1020 = vweird.f32 %v1014
  %vm1021 = vmor %vm1019, %vm1020
  %v1022 = vsel %vm1021, %v1014, %v1018
  %v1023 = vand.u32 2147483647, %v1013
  %vm1024 = vcmp.eq.f32.partialorder %v1023, 8.507059e+37
  %v1025 = vand.u32 %v1013, 2147483648
  %v1026 = vor.u32 1.1754944e-38, %v1025
  %v1027 = vsel %vm1024, %v1026, %v1022
  %v1028 = vmul.f32 1.0, %v1027
  %v1029 = vadd.f32 %v981, %v335
  %v1030 = vmul.f32 %v1004, %v1029
  %v1031 = vunpack.c.l.bf16 %v944
  %v1032 = vadd.f32 %v1031, %v1030
  %v1033 = vtanh.pop %v1032
  %v1034 = vsub.f32 1.0, %v1028
  %v1035 = vmul.f32 %v1034, %v1033
  %v1036 = vmul.f32 %v1028, %v938
  %v1037 = vadd.f32 %v1035, %v1036
  %v1038 = vpack.c.bf16 %v1037, %v1037
  %s1039 = scalar_lea.vmem %s3, 28
  %1040 = vst [vmem:[%s1039] sm:$0xf] %v1038
  %1041 = vst [vmem:[#allocation4] sm:$0xff] %v1037
  // Predicated region
  $region33: #{rnn_unit_forward.1} parent=0 // pred_check
    _
  $region34: #{rnn_unit_forward.1} parent=0 // pred_check_branch
    %1043 = sbr.rel (0) target = $region36
  $region35: #{rnn_unit_forward.1} parent=0 // pred_region
    _
  $region36: #{rnn_unit_forward.1} parent=0 // pred_fallthru
    _
  // Predicated region
  $region37: #{rnn_unit_forward.1} parent=0 // pred_check
    _
  $region38: #{rnn_unit_forward.1} parent=0 // pred_check_branch
    %1045 = sbr.rel (0) target = $region40
  $region39: #{rnn_unit_forward.1} parent=0 // pred_region
    _
  $region40: #{rnn_unit_forward.1} parent=0 // pred_fallthru
    _
  %1046 = vsyncmov [#allocation3]
  %s1047 = vpop.sfrf %1046
  %p1048 = scmp.eq.s32.totalorder %s1047, 0
  %p1049 = pneg %p1048
  %1051 = shalt.err (%p1049)

</llo_original>
